<compile_context>
chip_gen: v7x
topology: tpu7x:2x2x1
jax: 0.10.0
libtpu: 0.0.40
codegen_flags: <defaults>
</compile_context>

<pallas_src>
import jax
import jax.numpy as jnp
from jax import lax
from jax.experimental import pallas as pl
from jax.experimental.pallas import tpu as pltpu

# ---------------- model dims (small, consistent with the module) -------------
SEQ = 8           # L
BATCH = 2         # N
EMBED = 32        # embed_dim
HEADS = 4         # num_heads
HEAD_DIM = EMBED // HEADS
FF = 64           # feedforward_dim
LN_EPS = 1e-5
NEG_INF = -1e30   # additive mask value (exp underflows to exactly 0 in f32)


def _ln_fast(x, gamma, beta):
    """LayerNorm with var = E[x^2] - E[x]^2 (independent reductions)."""
    mean = jnp.mean(x, axis=-1, keepdims=True)
    mean_sq = jnp.mean(x * x, axis=-1, keepdims=True)
    var = mean_sq - mean * mean
    inv = lax.rsqrt(var + LN_EPS)
    return (x - mean) * inv * gamma + beta


def encoder_kernel(x_ref, wqkv_ref, wo_ref, w1_ref, w2_ref, vec_ref,
                   o_ref, ctx_ref):
    # x holds ALL rows of the batch: (R, E) with R = L * N, row r = l*N + n.
    R, E = x_ref.shape
    D = HEAD_DIM
    F = FF

    # ---- unpack the packed vector-operand slab (single DMA) ----
    bqkv = vec_ref[0:1, :]            # (1, 3E); Q part already scaled by 1/sqrt(D)
    bo = vec_ref[1:2, :E]
    g1 = vec_ref[2:3, :E]
    be1 = vec_ref[3:4, :E]
    b1 = vec_ref[4:5, :F]
    b2 = vec_ref[5:6, :E]
    g2 = vec_ref[6:7, :E]
    be2 = vec_ref[7:8, :E]

    x = x_ref[...].astype(jnp.float32)

    # ---- fused QKV projection over all rows (single MXU weight load) ----
    qkv = jnp.dot(x, wqkv_ref[...], preferred_element_type=jnp.float32) + bqkv

    # ---- in-kernel block-diagonal batch mask: rows i, j attend iff i%N == j%N ----
    row = lax.broadcasted_iota(jnp.int32, (R, R), 0)
    col = lax.broadcasted_iota(jnp.int32, (R, R), 1)
    if BATCH & (BATCH - 1) == 0:      # power-of-two batch -> cheap bit-and (VPU)
        same = (row & (BATCH - 1)) == (col & (BATCH - 1))
    else:
        same = (row % BATCH) == (col % BATCH)
    bias = jnp.where(same, jnp.float32(0.0), jnp.float32(NEG_INF))

    # ---- multi-head self-attention (heads unrolled; batch handled by mask) ----
    for h in range(HEADS):
        q_h = qkv[:, h * D:(h + 1) * D]                    # pre-scaled by 1/sqrt(D)
        k_h = qkv[:, E + h * D:E + (h + 1) * D]
        v_h = qkv[:, 2 * E + h * D:2 * E + (h + 1) * D]

        # contract last axes (no explicit transpose op)
        s = lax.dot_general(q_h, k_h, (((1,), (1,)), ((), ())),
                            preferred_element_type=jnp.float32) + bias
        s = s - jnp.max(s, axis=-1, keepdims=True)
        p = jnp.exp(s)                                     # masked entries -> exactly 0
        denom = jnp.sum(p, axis=-1, keepdims=True)

        # issue p@v first so the MXU overlaps the EUP reciprocal / Newton step
        ctx_un = jnp.dot(p, v_h, preferred_element_type=jnp.float32)   # (R, D)
        r = pl.reciprocal(denom, approx=True)              # EUP vrcp (free slot)
        r = r * (2.0 - denom * r)                          # one Newton step -> f32 accuracy
        ctx_ref[:, h * D:(h + 1) * D] = ctx_un * r         # static lane-offset write

    # ---- single output projection over all heads ----
    attn = jnp.dot(ctx_ref[...], wo_ref[...],
                   preferred_element_type=jnp.float32) + bo

    # ---- residual + layernorm1 ----
    y = _ln_fast(x + attn, g1, be1)

    # ---- feed-forward ----
    hdn = jnp.maximum(jnp.dot(y, w1_ref[...], preferred_element_type=jnp.float32) + b1, 0.0)
    ff = jnp.dot(hdn, w2_ref[...], preferred_element_type=jnp.float32) + b2

    # ---- residual + layernorm2 ----
    o_ref[...] = _ln_fast(y + ff, g2, be2).astype(o_ref.dtype)


def transformer_encoder(x_lne, kparams):
    """x_lne: (L, N, E), PyTorch's default (seq, batch, embed). No transposes needed."""
    L, N, E = x_lne.shape
    R = L * N
    x2 = x_lne.reshape(R, E)                 # free reshape; row r = l*N + n

    vmem = lambda: pl.BlockSpec(memory_space=pltpu.MemorySpace.VMEM)
    out2 = pl.pallas_call(
        encoder_kernel,
        out_shape=jax.ShapeDtypeStruct((R, E), x_lne.dtype),
        in_specs=[vmem() for _ in range(6)],
        out_specs=vmem(),
        scratch_shapes=[pltpu.VMEM((R, E), jnp.float32)],   # per-head ctx accumulator
    )(x2, kparams["wqkv"], kparams["wo"], kparams["w1"], kparams["w2"], kparams["vec"])
    return out2.reshape(L, N, E)


def init_params(key):
    """PyTorch-faithful parameterization (nn.MultiheadAttention / nn.Linear / nn.LayerNorm)."""
    ks = jax.random.split(key, 8)
    E, F = EMBED, FF
    return dict(
        in_proj_w=jax.random.normal(ks[0], (3 * E, E), jnp.float32) * 0.08,
        in_proj_b=jax.random.normal(ks[1], (3 * E,), jnp.float32) * 0.02,
        out_proj_w=jax.random.normal(ks[2], (E, E), jnp.float32) * 0.08,
        out_proj_b=jax.random.normal(ks[3], (E,), jnp.float32) * 0.02,
        lin1_w=jax.random.normal(ks[4], (F, E), jnp.float32) * 0.08,
        lin1_b=jax.random.normal(ks[5], (F,), jnp.float32) * 0.02,
        lin2_w=jax.random.normal(ks[6], (E, F), jnp.float32) * 0.08,
        lin2_b=jax.random.normal(ks[7], (E,), jnp.float32) * 0.02,
        ln1_g=jnp.ones((E,), jnp.float32), ln1_b=jnp.zeros((E,), jnp.float32),
        ln2_g=jnp.ones((E,), jnp.float32), ln2_b=jnp.zeros((E,), jnp.float32),
    )


def prepare_kernel_params(p):
    """One-time weight transform: transpose to x@W form, fold 1/sqrt(D) into Q,
    and pack the 8 small vector operands into one (8, 3E) slab."""
    E, F, D = EMBED, FF, HEAD_DIM
    scale = jnp.float32(1.0 / (D ** 0.5))

    wqkv = p["in_proj_w"].T                      # (E, 3E), columns [Q | K | V]
    wqkv = wqkv.at[:, :E].multiply(scale)        # fold score scale into Q weights
    bqkv = p["in_proj_b"].at[:E].multiply(scale)  # ... and Q bias

    vec = jnp.zeros((8, 3 * E), jnp.float32)
    vec = vec.at[0, :3 * E].set(bqkv)
    vec = vec.at[1, :E].set(p["out_proj_b"])
    vec = vec.at[2, :E].set(p["ln1_g"])
    vec = vec.at[3, :E].set(p["ln1_b"])
    vec = vec.at[4, :F].set(p["lin1_b"])
    vec = vec.at[5, :E].set(p["lin2_b"])
    vec = vec.at[6, :E].set(p["ln2_g"])
    vec = vec.at[7, :E].set(p["ln2_b"])

    return dict(
        wqkv=wqkv,
        wo=p["out_proj_w"].T,
        w1=p["lin1_w"].T,
        w2=p["lin2_w"].T,
        vec=vec,
    )


def _layer_norm_ref(x, gamma, beta):
    mean = jnp.mean(x, axis=-1, keepdims=True)
    var = jnp.mean(jnp.square(x - mean), axis=-1, keepdims=True)
    return (x - mean) * lax.rsqrt(var + LN_EPS) * gamma + beta


def reference(x_lne, p):
    """Pure-JAX reference mirroring the PyTorch forward (inference mode)."""
    E, D = EMBED, HEAD_DIM
    wq, wk, wv = p["in_proj_w"][:E], p["in_proj_w"][E:2 * E], p["in_proj_w"][2 * E:]
    bq, bk, bv = p["in_proj_b"][:E], p["in_proj_b"][E:2 * E], p["in_proj_b"][2 * E:]

    def one(x):  # x: (L, E), one batch element
        q = x @ wq.T + bq
        k = x @ wk.T + bk
        v = x @ wv.T + bv
        ctx = []
        for h in range(HEADS):
            sl = slice(h * D, (h + 1) * D)
            s = (q[:, sl] @ k[:, sl].T) / jnp.sqrt(jnp.float32(D))
            ctx.append(jax.nn.softmax(s, axis=-1) @ v[:, sl])
        attn = jnp.concatenate(ctx, -1) @ p["out_proj_w"].T + p["out_proj_b"]
        y = _layer_norm_ref(x + attn, p["ln1_g"], p["ln1_b"])
        ff = jnp.maximum(y @ p["lin1_w"].T + p["lin1_b"], 0.0) @ p["lin2_w"].T + p["lin2_b"]
        return _layer_norm_ref(y + ff, p["ln2_g"], p["ln2_b"])

    xb = jnp.transpose(x_lne, (1, 0, 2))                  # (N, L, E)
    out = jnp.stack([one(xb[i]) for i in range(xb.shape[0])], 0)
    return jnp.transpose(out, (1, 0, 2))                  # (L, N, E)


if __name__ == "__main__":
    key = jax.random.PRNGKey(0)
    kx, kp = jax.random.split(key)
    x = jax.random.normal(kx, (SEQ, BATCH, EMBED), jnp.float32)   # (L, N, E)
    params = init_params(kp)
    kparams = prepare_kernel_params(params)   # one-time transform, outside the call

    out = jax.block_until_ready(transformer_encoder(x, kparams))

    ref = reference(x, params)
    assert out.shape == (SEQ, BATCH, EMBED)
    assert jnp.allclose(out, ref, atol=1e-4, rtol=1e-4)
    print("KERNEL_OK")
</pallas_src>

<mosaic_0001>
module attributes {stable_mosaic.version = 11 : i64} {
  func.func @encoder_kernel(%arg0: memref<16x32xf32, #tpu.memory_space<vmem>>, %arg1: memref<32x96xf32, #tpu.memory_space<vmem>>, %arg2: memref<32x32xf32, #tpu.memory_space<vmem>>, %arg3: memref<32x64xf32, #tpu.memory_space<vmem>>, %arg4: memref<64x32xf32, #tpu.memory_space<vmem>>, %arg5: memref<8x96xf32, #tpu.memory_space<vmem>>, %arg6: memref<16x32xf32, #tpu.memory_space<vmem>>, %arg7: memref<16x32xf32, #tpu.memory_space<vmem>>) attributes {dimension_semantics = [], scalar_prefetch = 0 : i64, scratch_operands = 1 : i64, tpu.core_type = #tpu.core_type<tc>} {
    %c0 = arith.constant 0 : index
    %c0_0 = arith.constant 0 : index
    %0 = vector.load %arg5[%c0, %c0_0] : memref<8x96xf32, #tpu.memory_space<vmem>>, vector<1x96xf32>
    %c1 = arith.constant 1 : index
    %c0_1 = arith.constant 0 : index
    %1 = vector.load %arg5[%c1, %c0_1] : memref<8x96xf32, #tpu.memory_space<vmem>>, vector<1x32xf32>
    %c2 = arith.constant 2 : index
    %c0_2 = arith.constant 0 : index
    %2 = vector.load %arg5[%c2, %c0_2] : memref<8x96xf32, #tpu.memory_space<vmem>>, vector<1x32xf32>
    %c3 = arith.constant 3 : index
    %c0_3 = arith.constant 0 : index
    %3 = vector.load %arg5[%c3, %c0_3] : memref<8x96xf32, #tpu.memory_space<vmem>>, vector<1x32xf32>
    %c4 = arith.constant 4 : index
    %c0_4 = arith.constant 0 : index
    %4 = vector.load %arg5[%c4, %c0_4] : memref<8x96xf32, #tpu.memory_space<vmem>>, vector<1x64xf32>
    %c5 = arith.constant 5 : index
    %c0_5 = arith.constant 0 : index
    %5 = vector.load %arg5[%c5, %c0_5] : memref<8x96xf32, #tpu.memory_space<vmem>>, vector<1x32xf32>
    %c6 = arith.constant 6 : index
    %c0_6 = arith.constant 0 : index
    %6 = vector.load %arg5[%c6, %c0_6] : memref<8x96xf32, #tpu.memory_space<vmem>>, vector<1x32xf32>
    %c7 = arith.constant 7 : index
    %c0_7 = arith.constant 0 : index
    %7 = vector.load %arg5[%c7, %c0_7] : memref<8x96xf32, #tpu.memory_space<vmem>>, vector<1x32xf32>
    %c0_8 = arith.constant 0 : index
    %c0_9 = arith.constant 0 : index
    %8 = vector.load %arg0[%c0_8, %c0_9] : memref<16x32xf32, #tpu.memory_space<vmem>>, vector<16x32xf32>
    %c0_10 = arith.constant 0 : index
    %c0_11 = arith.constant 0 : index
    %9 = vector.load %arg1[%c0_10, %c0_11] : memref<32x96xf32, #tpu.memory_space<vmem>>, vector<32x96xf32>
    %cst = arith.constant dense<0.000000e+00> : vector<16x96xf32>
    %10 = tpu.matmul %8, %9, %cst {dimension_numbers = #tpu.dot_dimension_numbers<[1], [0], [0], [1], [0, 0, 1, 1], [], []>} : vector<16x32xf32>, vector<32x96xf32>, vector<16x96xf32> -> vector<16x96xf32>
    %11 = vector.broadcast %0 : vector<1x96xf32> to vector<16x96xf32>
    %12 = arith.addf %10, %11 : vector<16x96xf32>
    %13 = tpu.iota {dimensions = array<i32: 0>} : vector<16x16xi32>
    %14 = tpu.iota {dimensions = array<i32: 1>} : vector<16x16xi32>
    %c1_i32 = arith.constant 1 : i32
    %15 = vector.broadcast %c1_i32 : i32 to vector<16x16xi32>
    %16 = arith.andi %13, %15 : vector<16x16xi32>
    %c1_i32_12 = arith.constant 1 : i32
    %17 = vector.broadcast %c1_i32_12 : i32 to vector<16x16xi32>
    %18 = arith.andi %14, %17 : vector<16x16xi32>
    %19 = arith.cmpi eq, %16, %18 : vector<16x16xi32>
    %cst_13 = arith.constant 0.000000e+00 : f32
    %cst_14 = arith.constant -1.000000e+30 : f32
    %20 = vector.broadcast %cst_13 : f32 to vector<16x16xf32>
    %21 = vector.broadcast %cst_14 : f32 to vector<16x16xf32>
    %22 = arith.select %19, %20, %21 : vector<16x16xi1>, vector<16x16xf32>
    %23 = vector.extract_strided_slice %12 {offsets = [0, 0], sizes = [16, 8], strides = [1, 1]} : vector<16x96xf32> to vector<16x8xf32>
    %24 = vector.extract_strided_slice %12 {offsets = [0, 32], sizes = [16, 8], strides = [1, 1]} : vector<16x96xf32> to vector<16x8xf32>
    %25 = vector.extract_strided_slice %12 {offsets = [0, 64], sizes = [16, 8], strides = [1, 1]} : vector<16x96xf32> to vector<16x8xf32>
    %cst_15 = arith.constant dense<0.000000e+00> : vector<16x16xf32>
    %26 = tpu.matmul %23, %24, %cst_15 {dimension_numbers = #tpu.dot_dimension_numbers<[1], [1], [0], [0], [0, 0, 1, 0], [], []>} : vector<16x8xf32>, vector<16x8xf32>, vector<16x16xf32> -> vector<16x16xf32>
    %27 = arith.addf %26, %22 : vector<16x16xf32>
    %cst_16 = arith.constant dense<0xFF800000> : vector<16xf32>
    %28 = vector.multi_reduction <maximumf>, %27, %cst_16 [1] : vector<16x16xf32> to vector<16xf32>
    %29 = vector.shape_cast %28 : vector<16xf32> to vector<16x1xf32>
    %30 = vector.broadcast %29 : vector<16x1xf32> to vector<16x16xf32>
    %31 = arith.subf %27, %30 : vector<16x16xf32>
    %32 = math.exp %31 : vector<16x16xf32>
    %cst_17 = arith.constant dense<0.000000e+00> : vector<16xf32>
    %33 = vector.multi_reduction <add>, %32, %cst_17 [1] : vector<16x16xf32> to vector<16xf32>
    %34 = vector.shape_cast %33 : vector<16xf32> to vector<16x1xf32>
    %cst_18 = arith.constant dense<0.000000e+00> : vector<16x8xf32>
    %35 = tpu.matmul %32, %25, %cst_18 {dimension_numbers = #tpu.dot_dimension_numbers<[1], [0], [0], [1], [0, 0, 1, 1], [], []>} : vector<16x16xf32>, vector<16x8xf32>, vector<16x8xf32> -> vector<16x8xf32>
    %36 = tpu.reciprocal %34 {approx = true} : vector<16x1xf32> -> vector<16x1xf32>
    %37 = arith.mulf %34, %36 : vector<16x1xf32>
    %cst_19 = arith.constant 2.000000e+00 : f32
    %38 = vector.broadcast %cst_19 : f32 to vector<16x1xf32>
    %39 = arith.subf %38, %37 : vector<16x1xf32>
    %40 = arith.mulf %36, %39 : vector<16x1xf32>
    %41 = vector.broadcast %40 : vector<16x1xf32> to vector<16x8xf32>
    %42 = arith.mulf %35, %41 : vector<16x8xf32>
    %c0_20 = arith.constant 0 : index
    %c0_21 = arith.constant 0 : index
    %43 = vector.load %arg7[%c0_20, %c0_21] : memref<16x32xf32, #tpu.memory_space<vmem>>, vector<16x8xf32>
    tpu.vector_store %arg7[%c0_20, %c0_21], %42 {strides = array<i32>} : memref<16x32xf32, #tpu.memory_space<vmem>>, vector<16x8xf32>,
    %44 = vector.extract_strided_slice %12 {offsets = [0, 8], sizes = [16, 8], strides = [1, 1]} : vector<16x96xf32> to vector<16x8xf32>
    %45 = vector.extract_strided_slice %12 {offsets = [0, 40], sizes = [16, 8], strides = [1, 1]} : vector<16x96xf32> to vector<16x8xf32>
    %46 = vector.extract_strided_slice %12 {offsets = [0, 72], sizes = [16, 8], strides = [1, 1]} : vector<16x96xf32> to vector<16x8xf32>
    %cst_22 = arith.constant dense<0.000000e+00> : vector<16x16xf32>
    %47 = tpu.matmul %44, %45, %cst_22 {dimension_numbers = #tpu.dot_dimension_numbers<[1], [1], [0], [0], [0, 0, 1, 0], [], []>} : vector<16x8xf32>, vector<16x8xf32>, vector<16x16xf32> -> vector<16x16xf32>
    %48 = arith.addf %47, %22 : vector<16x16xf32>
    %cst_23 = arith.constant dense<0xFF800000> : vector<16xf32>
    %49 = vector.multi_reduction <maximumf>, %48, %cst_23 [1] : vector<16x16xf32> to vector<16xf32>
    %50 = vector.shape_cast %49 : vector<16xf32> to vector<16x1xf32>
    %51 = vector.broadcast %50 : vector<16x1xf32> to vector<16x16xf32>
    %52 = arith.subf %48, %51 : vector<16x16xf32>
    %53 = math.exp %52 : vector<16x16xf32>
    %cst_24 = arith.constant dense<0.000000e+00> : vector<16xf32>
    %54 = vector.multi_reduction <add>, %53, %cst_24 [1] : vector<16x16xf32> to vector<16xf32>
    %55 = vector.shape_cast %54 : vector<16xf32> to vector<16x1xf32>
    %cst_25 = arith.constant dense<0.000000e+00> : vector<16x8xf32>
    %56 = tpu.matmul %53, %46, %cst_25 {dimension_numbers = #tpu.dot_dimension_numbers<[1], [0], [0], [1], [0, 0, 1, 1], [], []>} : vector<16x16xf32>, vector<16x8xf32>, vector<16x8xf32> -> vector<16x8xf32>
    %57 = tpu.reciprocal %55 {approx = true} : vector<16x1xf32> -> vector<16x1xf32>
    %58 = arith.mulf %55, %57 : vector<16x1xf32>
    %cst_26 = arith.constant 2.000000e+00 : f32
    %59 = vector.broadcast %cst_26 : f32 to vector<16x1xf32>
    %60 = arith.subf %59, %58 : vector<16x1xf32>
    %61 = arith.mulf %57, %60 : vector<16x1xf32>
    %62 = vector.broadcast %61 : vector<16x1xf32> to vector<16x8xf32>
    %63 = arith.mulf %56, %62 : vector<16x8xf32>
    %c0_27 = arith.constant 0 : index
    %c8 = arith.constant 8 : index
    %64 = vector.load %arg7[%c0_27, %c8] : memref<16x32xf32, #tpu.memory_space<vmem>>, vector<16x8xf32>
    tpu.vector_store %arg7[%c0_27, %c8], %63 {strides = array<i32>} : memref<16x32xf32, #tpu.memory_space<vmem>>, vector<16x8xf32>,
    %65 = vector.extract_strided_slice %12 {offsets = [0, 16], sizes = [16, 8], strides = [1, 1]} : vector<16x96xf32> to vector<16x8xf32>
    %66 = vector.extract_strided_slice %12 {offsets = [0, 48], sizes = [16, 8], strides = [1, 1]} : vector<16x96xf32> to vector<16x8xf32>
    %67 = vector.extract_strided_slice %12 {offsets = [0, 80], sizes = [16, 8], strides = [1, 1]} : vector<16x96xf32> to vector<16x8xf32>
    %cst_28 = arith.constant dense<0.000000e+00> : vector<16x16xf32>
    %68 = tpu.matmul %65, %66, %cst_28 {dimension_numbers = #tpu.dot_dimension_numbers<[1], [1], [0], [0], [0, 0, 1, 0], [], []>} : vector<16x8xf32>, vector<16x8xf32>, vector<16x16xf32> -> vector<16x16xf32>
    %69 = arith.addf %68, %22 : vector<16x16xf32>
    %cst_29 = arith.constant dense<0xFF800000> : vector<16xf32>
    %70 = vector.multi_reduction <maximumf>, %69, %cst_29 [1] : vector<16x16xf32> to vector<16xf32>
    %71 = vector.shape_cast %70 : vector<16xf32> to vector<16x1xf32>
    %72 = vector.broadcast %71 : vector<16x1xf32> to vector<16x16xf32>
    %73 = arith.subf %69, %72 : vector<16x16xf32>
    %74 = math.exp %73 : vector<16x16xf32>
    %cst_30 = arith.constant dense<0.000000e+00> : vector<16xf32>
    %75 = vector.multi_reduction <add>, %74, %cst_30 [1] : vector<16x16xf32> to vector<16xf32>
    %76 = vector.shape_cast %75 : vector<16xf32> to vector<16x1xf32>
    %cst_31 = arith.constant dense<0.000000e+00> : vector<16x8xf32>
    %77 = tpu.matmul %74, %67, %cst_31 {dimension_numbers = #tpu.dot_dimension_numbers<[1], [0], [0], [1], [0, 0, 1, 1], [], []>} : vector<16x16xf32>, vector<16x8xf32>, vector<16x8xf32> -> vector<16x8xf32>
    %78 = tpu.reciprocal %76 {approx = true} : vector<16x1xf32> -> vector<16x1xf32>
    %79 = arith.mulf %76, %78 : vector<16x1xf32>
    %cst_32 = arith.constant 2.000000e+00 : f32
    %80 = vector.broadcast %cst_32 : f32 to vector<16x1xf32>
    %81 = arith.subf %80, %79 : vector<16x1xf32>
    %82 = arith.mulf %78, %81 : vector<16x1xf32>
    %83 = vector.broadcast %82 : vector<16x1xf32> to vector<16x8xf32>
    %84 = arith.mulf %77, %83 : vector<16x8xf32>
    %c0_33 = arith.constant 0 : index
    %c16 = arith.constant 16 : index
    %85 = vector.load %arg7[%c0_33, %c16] : memref<16x32xf32, #tpu.memory_space<vmem>>, vector<16x8xf32>
    tpu.vector_store %arg7[%c0_33, %c16], %84 {strides = array<i32>} : memref<16x32xf32, #tpu.memory_space<vmem>>, vector<16x8xf32>,
    %86 = vector.extract_strided_slice %12 {offsets = [0, 24], sizes = [16, 8], strides = [1, 1]} : vector<16x96xf32> to vector<16x8xf32>
    %87 = vector.extract_strided_slice %12 {offsets = [0, 56], sizes = [16, 8], strides = [1, 1]} : vector<16x96xf32> to vector<16x8xf32>
    %88 = vector.extract_strided_slice %12 {offsets = [0, 88], sizes = [16, 8], strides = [1, 1]} : vector<16x96xf32> to vector<16x8xf32>
    %cst_34 = arith.constant dense<0.000000e+00> : vector<16x16xf32>
    %89 = tpu.matmul %86, %87, %cst_34 {dimension_numbers = #tpu.dot_dimension_numbers<[1], [1], [0], [0], [0, 0, 1, 0], [], []>} : vector<16x8xf32>, vector<16x8xf32>, vector<16x16xf32> -> vector<16x16xf32>
    %90 = arith.addf %89, %22 : vector<16x16xf32>
    %cst_35 = arith.constant dense<0xFF800000> : vector<16xf32>
    %91 = vector.multi_reduction <maximumf>, %90, %cst_35 [1] : vector<16x16xf32> to vector<16xf32>
    %92 = vector.shape_cast %91 : vector<16xf32> to vector<16x1xf32>
    %93 = vector.broadcast %92 : vector<16x1xf32> to vector<16x16xf32>
    %94 = arith.subf %90, %93 : vector<16x16xf32>
    %95 = math.exp %94 : vector<16x16xf32>
    %cst_36 = arith.constant dense<0.000000e+00> : vector<16xf32>
    %96 = vector.multi_reduction <add>, %95, %cst_36 [1] : vector<16x16xf32> to vector<16xf32>
    %97 = vector.shape_cast %96 : vector<16xf32> to vector<16x1xf32>
    %cst_37 = arith.constant dense<0.000000e+00> : vector<16x8xf32>
    %98 = tpu.matmul %95, %88, %cst_37 {dimension_numbers = #tpu.dot_dimension_numbers<[1], [0], [0], [1], [0, 0, 1, 1], [], []>} : vector<16x16xf32>, vector<16x8xf32>, vector<16x8xf32> -> vector<16x8xf32>
    %99 = tpu.reciprocal %97 {approx = true} : vector<16x1xf32> -> vector<16x1xf32>
    %100 = arith.mulf %97, %99 : vector<16x1xf32>
    %cst_38 = arith.constant 2.000000e+00 : f32
    %101 = vector.broadcast %cst_38 : f32 to vector<16x1xf32>
    %102 = arith.subf %101, %100 : vector<16x1xf32>
    %103 = arith.mulf %99, %102 : vector<16x1xf32>
    %104 = vector.broadcast %103 : vector<16x1xf32> to vector<16x8xf32>
    %105 = arith.mulf %98, %104 : vector<16x8xf32>
    %c0_39 = arith.constant 0 : index
    %c24 = arith.constant 24 : index
    %106 = vector.load %arg7[%c0_39, %c24] : memref<16x32xf32, #tpu.memory_space<vmem>>, vector<16x8xf32>
    tpu.vector_store %arg7[%c0_39, %c24], %105 {strides = array<i32>} : memref<16x32xf32, #tpu.memory_space<vmem>>, vector<16x8xf32>,
    %c0_40 = arith.constant 0 : index
    %c0_41 = arith.constant 0 : index
    %107 = vector.load %arg7[%c0_40, %c0_41] : memref<16x32xf32, #tpu.memory_space<vmem>>, vector<16x32xf32>
    %c0_42 = arith.constant 0 : index
    %c0_43 = arith.constant 0 : index
    %108 = vector.load %arg2[%c0_42, %c0_43] : memref<32x32xf32, #tpu.memory_space<vmem>>, vector<32x32xf32>
    %cst_44 = arith.constant dense<0.000000e+00> : vector<16x32xf32>
    %109 = tpu.matmul %107, %108, %cst_44 {dimension_numbers = #tpu.dot_dimension_numbers<[1], [0], [0], [1], [0, 0, 1, 1], [], []>} : vector<16x32xf32>, vector<32x32xf32>, vector<16x32xf32> -> vector<16x32xf32>
    %110 = vector.broadcast %1 : vector<1x32xf32> to vector<16x32xf32>
    %111 = arith.addf %109, %110 : vector<16x32xf32>
    %112 = arith.addf %8, %111 : vector<16x32xf32>
    %cst_45 = arith.constant dense<0.000000e+00> : vector<16xf32>
    %113 = vector.multi_reduction <add>, %112, %cst_45 [1] : vector<16x32xf32> to vector<16xf32>
    %114 = vector.shape_cast %113 : vector<16xf32> to vector<16x1xf32>
    %cst_46 = arith.constant 3.200000e+01 : f32
    %115 = vector.broadcast %cst_46 : f32 to vector<16x1xf32>
    %116 = arith.divf %114, %115 : vector<16x1xf32>
    %117 = arith.mulf %112, %112 : vector<16x32xf32>
    %cst_47 = arith.constant dense<0.000000e+00> : vector<16xf32>
    %118 = vector.multi_reduction <add>, %117, %cst_47 [1] : vector<16x32xf32> to vector<16xf32>
    %119 = vector.shape_cast %118 : vector<16xf32> to vector<16x1xf32>
    %cst_48 = arith.constant 3.200000e+01 : f32
    %120 = vector.broadcast %cst_48 : f32 to vector<16x1xf32>
    %121 = arith.divf %119, %120 : vector<16x1xf32>
    %122 = arith.mulf %116, %116 : vector<16x1xf32>
    %123 = arith.subf %121, %122 : vector<16x1xf32>
    %cst_49 = arith.constant 9.99999974E-6 : f32
    %124 = vector.broadcast %cst_49 : f32 to vector<16x1xf32>
    %125 = arith.addf %123, %124 : vector<16x1xf32>
    %126 = math.rsqrt %125 : vector<16x1xf32>
    %127 = vector.broadcast %116 : vector<16x1xf32> to vector<16x32xf32>
    %128 = arith.subf %112, %127 : vector<16x32xf32>
    %129 = vector.broadcast %126 : vector<16x1xf32> to vector<16x32xf32>
    %130 = arith.mulf %128, %129 : vector<16x32xf32>
    %131 = vector.broadcast %2 : vector<1x32xf32> to vector<16x32xf32>
    %132 = arith.mulf %130, %131 : vector<16x32xf32>
    %133 = vector.broadcast %3 : vector<1x32xf32> to vector<16x32xf32>
    %134 = arith.addf %132, %133 : vector<16x32xf32>
    %c0_50 = arith.constant 0 : index
    %c0_51 = arith.constant 0 : index
    %135 = vector.load %arg3[%c0_50, %c0_51] : memref<32x64xf32, #tpu.memory_space<vmem>>, vector<32x64xf32>
    %cst_52 = arith.constant dense<0.000000e+00> : vector<16x64xf32>
    %136 = tpu.matmul %134, %135, %cst_52 {dimension_numbers = #tpu.dot_dimension_numbers<[1], [0], [0], [1], [0, 0, 1, 1], [], []>} : vector<16x32xf32>, vector<32x64xf32>, vector<16x64xf32> -> vector<16x64xf32>
    %137 = vector.broadcast %4 : vector<1x64xf32> to vector<16x64xf32>
    %138 = arith.addf %136, %137 : vector<16x64xf32>
    %cst_53 = arith.constant 0.000000e+00 : f32
    %139 = vector.broadcast %cst_53 : f32 to vector<16x64xf32>
    %140 = arith.maximumf %138, %139 : vector<16x64xf32>
    %c0_54 = arith.constant 0 : index
    %c0_55 = arith.constant 0 : index
    %141 = vector.load %arg4[%c0_54, %c0_55] : memref<64x32xf32, #tpu.memory_space<vmem>>, vector<64x32xf32>
    %cst_56 = arith.constant dense<0.000000e+00> : vector<16x32xf32>
    %142 = tpu.matmul %140, %141, %cst_56 {dimension_numbers = #tpu.dot_dimension_numbers<[1], [0], [0], [1], [0, 0, 1, 1], [], []>} : vector<16x64xf32>, vector<64x32xf32>, vector<16x32xf32> -> vector<16x32xf32>
    %143 = vector.broadcast %5 : vector<1x32xf32> to vector<16x32xf32>
    %144 = arith.addf %142, %143 : vector<16x32xf32>
    %145 = arith.addf %134, %144 : vector<16x32xf32>
    %cst_57 = arith.constant dense<0.000000e+00> : vector<16xf32>
    %146 = vector.multi_reduction <add>, %145, %cst_57 [1] : vector<16x32xf32> to vector<16xf32>
    %147 = vector.shape_cast %146 : vector<16xf32> to vector<16x1xf32>
    %cst_58 = arith.constant 3.200000e+01 : f32
    %148 = vector.broadcast %cst_58 : f32 to vector<16x1xf32>
    %149 = arith.divf %147, %148 : vector<16x1xf32>
    %150 = arith.mulf %145, %145 : vector<16x32xf32>
    %cst_59 = arith.constant dense<0.000000e+00> : vector<16xf32>
    %151 = vector.multi_reduction <add>, %150, %cst_59 [1] : vector<16x32xf32> to vector<16xf32>
    %152 = vector.shape_cast %151 : vector<16xf32> to vector<16x1xf32>
    %cst_60 = arith.constant 3.200000e+01 : f32
    %153 = vector.broadcast %cst_60 : f32 to vector<16x1xf32>
    %154 = arith.divf %152, %153 : vector<16x1xf32>
    %155 = arith.mulf %149, %149 : vector<16x1xf32>
    %156 = arith.subf %154, %155 : vector<16x1xf32>
    %cst_61 = arith.constant 9.99999974E-6 : f32
    %157 = vector.broadcast %cst_61 : f32 to vector<16x1xf32>
    %158 = arith.addf %156, %157 : vector<16x1xf32>
    %159 = math.rsqrt %158 : vector<16x1xf32>
    %160 = vector.broadcast %149 : vector<16x1xf32> to vector<16x32xf32>
    %161 = arith.subf %145, %160 : vector<16x32xf32>
    %162 = vector.broadcast %159 : vector<16x1xf32> to vector<16x32xf32>
    %163 = arith.mulf %161, %162 : vector<16x32xf32>
    %164 = vector.broadcast %6 : vector<1x32xf32> to vector<16x32xf32>
    %165 = arith.mulf %163, %164 : vector<16x32xf32>
    %166 = vector.broadcast %7 : vector<1x32xf32> to vector<16x32xf32>
    %167 = arith.addf %165, %166 : vector<16x32xf32>
    %c0_62 = arith.constant 0 : index
    %c0_63 = arith.constant 0 : index
    %168 = vector.load %arg6[%c0_62, %c0_63] : memref<16x32xf32, #tpu.memory_space<vmem>>, vector<16x32xf32>
    tpu.vector_store %arg6[%c0_62, %c0_63], %167 {strides = array<i32>} : memref<16x32xf32, #tpu.memory_space<vmem>>, vector<16x32xf32>,
    return
  }
}

</mosaic_0001>

<llo_original>
// kernel: tpu_custom_call.1
$region0: #{tpu_custom_call.1}
  #allocation0 [shape = 'u32[]', space=smem, size = 0x4, offset = 0x4, fixed_abs, tag = 'smem constant byte address 0x4 - core index']
  #allocation1 [shape = 'u32[144,128]{1,0:T(1,128)}', space=vmem, size = 0x12000, scoped, tag = 'internal scratch']
  #allocation2 [shape = 'f32[16,32]{1,0:T(8,128)}', space=vmem, size = 0x2000, scoped, tag = 'scratch operand']
  %s0 = inlined_call_operand.hbm [shape: f32[16,32], index: 0, kind: input, shape index: {}]
  %s1 = inlined_call_operand.vmem [shape: f32[32,96], index: 1, kind: input, shape index: {}]
  %s2 = inlined_call_operand.vmem [shape: f32[32,32], index: 2, kind: input, shape index: {}]
  %s3 = inlined_call_operand.vmem [shape: f32[32,64], index: 3, kind: input, shape index: {}]
  %s4 = inlined_call_operand.vmem [shape: f32[64,32], index: 4, kind: input, shape index: {}]
  %s5 = inlined_call_operand.vmem [shape: f32[8,96], index: 5, kind: input, shape index: {}]
  %s6 = inlined_call_operand.hbm [shape: f32[16,32], index: 6, kind: output, shape index: {}]
  %s7 = sld [smem:[#allocation0]]
  $region38: #{tpu_custom_call.1} parent=0
    _
  %s9 = ssub.s32 1, %s7
  %s10 = scalar_select 0, %s9, %s7
  $region1: #{tpu_custom_call.1} parent=0
    #allocation3 [shape = 'u8[8192]{0}', space=vmem, size = 0x2000, scoped, tag = 'input window, operand 0, single buffered']
    #allocation4 [shape = 's32[1]{0}', space=sflag, size = 0x4, scoped, tag = 'scoped memory for tpu_custom_call.1']
    #allocation5 [shape = 's32[1]{0}', space=sflag, size = 0x4, scoped, tag = 'scoped memory for tpu_custom_call.1']
    #allocation6 [shape = 'u8[8192]{0}', space=vmem, size = 0x2000, scoped, tag = 'output window, operand 0, single buffered']
    %11 = vsyncpa [#allocation4], 0
    %12 = vsyncpa [#allocation5], 0
    // Predicated region
    $region2: #{tpu_custom_call.1} parent=1 // pred_check
      _
    $region3: #{tpu_custom_call.1} parent=1 // pred_check_branch
      %14 = sbr.rel (0) target = $region5
    $region4: #{tpu_custom_call.1} parent=1 // pred_region
      %s16 = ssub.s32 256, 256
      %17 = vsyncadd [#allocation4], %s16
      %s18 = sshll.u32 [#allocation3], 4
      %s19 = int_to_ptr.vmem [resolvable:$true] %s18
      %24 = dma.hbm_to_vmem [thread:$0]  %s0, 256, %s19, [#allocation4], 128, 128, 8
    $region5: #{tpu_custom_call.1} parent=1 // pred_fallthru
      _
    // Predicated region
    $region6: #{tpu_custom_call.1} parent=1 // pred_check
      _
    $region7: #{tpu_custom_call.1} parent=1 // pred_check_branch
      %26 = sbr.rel (0) target = $region9
    $region8: #{tpu_custom_call.1} parent=1 // pred_region
      _
    $region9: #{tpu_custom_call.1} parent=1 // pred_fallthru
      _
    // Predicated region
    $region10: #{tpu_custom_call.1} parent=1 // pred_check
      _
    $region11: #{tpu_custom_call.1} parent=1 // pred_check_branch
      %28 = sbr.rel (0) target = $region13
    $region12: #{tpu_custom_call.1} parent=1 // pred_region
      _
    $region13: #{tpu_custom_call.1} parent=1 // pred_fallthru
      _
    // Predicated region
    $region14: #{tpu_custom_call.1} parent=1 // pred_check
      _
    $region15: #{tpu_custom_call.1} parent=1 // pred_check_branch
      %30 = sbr.rel (0) target = $region17
    $region16: #{tpu_custom_call.1} parent=1 // pred_region
      _
    $region17: #{tpu_custom_call.1} parent=1 // pred_fallthru
      _
    // Predicated region
    $region18: #{tpu_custom_call.1} parent=1 // pred_check
      _
    $region19: #{tpu_custom_call.1} parent=1 // pred_check_branch
      %32 = sbr.rel (0) target = $region21
    $region20: #{tpu_custom_call.1} parent=1 // pred_region
      _
    $region21: #{tpu_custom_call.1} parent=1 // pred_fallthru
      _
    // Predicated region
    $region22: #{tpu_custom_call.1} parent=1 // pred_check
      _
    $region23: #{tpu_custom_call.1} parent=1 // pred_check_branch
      %34 = sbr.rel (0) target = $region25
    $region24: #{tpu_custom_call.1} parent=1 // pred_region
      _
    $region25: #{tpu_custom_call.1} parent=1 // pred_fallthru
      _
    // Predicated region
    $region26: #{tpu_custom_call.1} parent=1 // pred_check
      _
    $region27: #{tpu_custom_call.1} parent=1 // pred_check_branch
      %36 = sbr.rel (0) target = $region29
    $region28: #{tpu_custom_call.1} parent=1 // pred_region
      %37 = dma.done [#allocation4], 256
    $region29: #{tpu_custom_call.1} parent=1 // pred_fallthru
      _
    %v38 = vld [vmem:[%s5] sm:$0x1]
    %v39 = vld [vmem:[%s5 + $0x1] sm:$0x1]
    %v40 = vld [vmem:[%s5 + $0x2] sm:$0x1]
    %v41 = vld [vmem:[%s5 + $0x3] sm:$0x1]
    %v42 = vld [vmem:[%s5 + $0x4] sm:$0x1]
    %v43 = vld [vmem:[%s5 + $0x5] sm:$0x1]
    %v44 = vld [vmem:[%s5 + $0x6] sm:$0x1]
    %v45 = vld [vmem:[%s5 + $0x7] sm:$0x1]
    %v46 = vld [vmem:[#allocation3] sm:$0xff]
    %v47 = vld [vmem:[#allocation3 + $0x8] sm:$0xff]
    %v48 = vld [vmem:[%s1] sm:$0xff]
    %v49 = vld [vmem:[%s1 + $0x8] sm:$0xff]
    %v50 = vld [vmem:[%s1 + $0x10] sm:$0xff]
    %v51 = vld [vmem:[%s1 + $0x18] sm:$0xff]
    %v52 = vlaneseq
    %v53 = vshrl.u32 %v52, 7
    %v54 = vsub.s32 0, %v53
    %v55 = vrot.slane %v38, %v54
    %vm56 = vcmask 261120
    %v58 = vsel %vm56, %v46, 0
    %v61 = vsel %vm56, %v47, 0
    %63 = vmatprep.subr.mxu0 0.0
    %64 = vmatpush1.msra.mxu0 %v48
    %65 = vmatprep.subr.mxu0 0.0
    %66 = vmatpush1.msra.mxu0 %v49
    %67 = vmatprep.subr.mxu0 0.0
    %68 = vmatpush1.msra.mxu0 %v50
    %69 = vmatprep.subr.mxu0 0.0
    %70 = vmatpush1.msra.mxu0 %v51
    %71 = vmatprep.subr.mxu0 0.0
    %72 = vmatpush1.msra.mxu0 0.0
    %73 = vmatprep.subr.mxu0 0.0
    %74 = vmatpush1.msra.mxu0 0.0
    %75 = vmatprep.subr.mxu0 0.0
    %76 = vmatpush1.msra.mxu0 0.0
    %77 = vmatprep.subr.mxu0 0.0
    %78 = vmatpush1.msra.mxu0 0.0
    %79 = vmatprep.subr.mxu0 0.0
    %80 = vmatpush1.msra.mxu0 0.0
    %81 = vmatprep.subr.mxu0 0.0
    %82 = vmatpush1.msra.mxu0 0.0
    %83 = vmatprep.subr.mxu0 0.0
    %84 = vmatpush1.msra.mxu0 0.0
    %85 = vmatprep.subr.mxu0 0.0
    %86 = vmatpush1.msra.mxu0 0.0
    %87 = vmatprep.subr.mxu0 0.0
    %88 = vmatpush1.msra.mxu0 0.0
    %89 = vmatprep.subr.mxu0 0.0
    %90 = vmatpush1.msra.mxu0 0.0
    %91 = vmatprep.subr.mxu0 0.0
    %92 = vmatpush1.msra.mxu0 0.0
    %93 = vmatprep.subr.mxu0 0.0
    %94 = vmatpush1.msra.mxu0 0.0
    %95 = vmatprep.subr.mxu0 0.0
    %96 = vmatpush1.msra.mxu0 0.0
    %97 = vmatprep.subr.mxu0 0.0
    %98 = vmatpush1.msra.mxu0 0.0
    %99 = vmatprep.subr.mxu0 0.0
    %100 = vmatpush1.msra.mxu0 0.0
    %101 = vmatprep.subr.mxu0 0.0
    %102 = vmatpush1.msra.mxu0 0.0
    %103 = vmatprep.subr.mxu0 0.0
    %104 = vmatpush1.msra.mxu0 0.0
    %105 = vmatprep.subr.mxu0 0.0
    %106 = vmatpush1.msra.mxu0 0.0
    %107 = vmatprep.subr.mxu0 0.0
    %108 = vmatpush1.msra.mxu0 0.0
    %109 = vmatprep.subr.mxu0 0.0
    %110 = vmatpush1.msra.mxu0 0.0
    %111 = vmatprep.subr.mxu0 0.0
    %112 = vmatpush1.msra.mxu0 0.0
    %113 = vmatprep.subr.mxu0 0.0
    %114 = vmatpush1.msra.mxu0 0.0
    %115 = vmatprep.subr.mxu0 0.0
    %116 = vmatpush1.msra.mxu0 0.0
    %117 = vmatprep.subr.mxu0 0.0
    %118 = vmatpush1.msra.mxu0 0.0
    %119 = vmatprep.subr.mxu0 0.0
    %120 = vmatpush1.msra.mxu0 0.0
    %121 = vmatprep.subr.mxu0 0.0
    %122 = vmatpush1.msra.mxu0 0.0
    %123 = vmatprep.subr.mxu0 0.0
    %124 = vmatpush1.msra.mxu0 0.0
    %125 = vmatprep.subr.mxu0 0.0
    %126 = vmatpush1.msra.mxu0 0.0
    %127 = vmatprep.mubr.f32.mxu0 0.0
    %128 = vmatmul.mubr.f32.gmra.mrb[0].mxu0 %v58
    %v129 = vpop.f32.mrb[0].mxu0
    %v130 = vadd.f32 %v55, %v129
    %v131 = vpop.f32.mrb[0].mxu0
    %132 = vmatprep.mubr.f32.mxu0 0.0
    %133 = vmatmul.mubr.f32.gmra.mrb[0].mxu0 %v61
    %v134 = vpop.f32.mrb[0].mxu0
    %v135 = vadd.f32 %v55, %v134
    %v136 = vpop.f32.mrb[0].mxu0
    %137 = vdwg.mxu0
    %v138 = vlaneseq
    %v139 = vshrl.u32 %v138, 7
    %v140 = vadd.s32 %v139, 8
    %v141 = vlaneseq
    %v142 = vand.u32 %v141, 127
    %v143 = vand.u32 %v139, 1
    %v144 = vand.u32 %v140, 1
    %v145 = vand.u32 %v142, 1
    %vm146 = vcmp.eq.s32.totalorder %v143, %v145
    %vm147 = vcmp.eq.s32.totalorder %v144, %v145
    %v148 = vsel %vm146, 0.0, -1e+30
    %v149 = vsel %vm147, 0.0, -1e+30
    %152 = vrot.lane.b32.xlu0 %v130, 96
    %v153 = vpop.permute.xlu0 %152
    %154 = vrot.lane.b32.xlu0 %v135, 96
    %v155 = vpop.permute.xlu0 %154
    %vm156 = vcmask 64512
    %v157 = vsel %vm156, %v130, 0
    %v159 = vsel %vm156, %v135, 0
    %v161 = vsel %vm156, %v153, 0
    %v163 = vsel %vm156, %v155, 0
    %165 = vmatprep.subr.mxu0 0.0
    %166 = vmatpush1.xpose.msra.mxu0 %v161
    %167 = vmatprep.subr.mxu0 0.0
    %168 = vmatpush1.xpose.msra.mxu0 %v163
    %169 = vmatprep.subr.mxu0 0.0
    %170 = vmatpush1.xpose.msra.mxu0 0.0
    %171 = vmatprep.subr.mxu0 0.0
    %172 = vmatpush1.xpose.msra.mxu0 0.0
    %173 = vmatprep.subr.mxu0 0.0
    %174 = vmatpush1.xpose.msra.mxu0 0.0
    %175 = vmatprep.subr.mxu0 0.0
    %176 = vmatpush1.xpose.msra.mxu0 0.0
    %177 = vmatprep.subr.mxu0 0.0
    %178 = vmatpush1.xpose.msra.mxu0 0.0
    %179 = vmatprep.subr.mxu0 0.0
    %180 = vmatpush1.xpose.msra.mxu0 0.0
    %181 = vmatprep.subr.mxu0 0.0
    %182 = vmatpush1.xpose.msra.mxu0 0.0
    %183 = vmatprep.subr.mxu0 0.0
    %184 = vmatpush1.xpose.msra.mxu0 0.0
    %185 = vmatprep.subr.mxu0 0.0
    %186 = vmatpush1.xpose.msra.mxu0 0.0
    %187 = vmatprep.subr.mxu0 0.0
    %188 = vmatpush1.xpose.msra.mxu0 0.0
    %189 = vmatprep.subr.mxu0 0.0
    %190 = vmatpush1.xpose.msra.mxu0 0.0
    %191 = vmatprep.subr.mxu0 0.0
    %192 = vmatpush1.xpose.msra.mxu0 0.0
    %193 = vmatprep.subr.mxu0 0.0
    %194 = vmatpush1.xpose.msra.mxu0 0.0
    %195 = vmatprep.subr.mxu0 0.0
    %196 = vmatpush1.xpose.msra.mxu0 0.0
    %197 = vmatprep.subr.mxu0 0.0
    %198 = vmatpush1.xpose.msra.mxu0 0.0
    %199 = vmatprep.subr.mxu0 0.0
    %200 = vmatpush1.xpose.msra.mxu0 0.0
    %201 = vmatprep.subr.mxu0 0.0
    %202 = vmatpush1.xpose.msra.mxu0 0.0
    %203 = vmatprep.subr.mxu0 0.0
    %204 = vmatpush1.xpose.msra.mxu0 0.0
    %205 = vmatprep.subr.mxu0 0.0
    %206 = vmatpush1.xpose.msra.mxu0 0.0
    %207 = vmatprep.subr.mxu0 0.0
    %208 = vmatpush1.xpose.msra.mxu0 0.0
    %209 = vmatprep.subr.mxu0 0.0
    %210 = vmatpush1.xpose.msra.mxu0 0.0
    %211 = vmatprep.subr.mxu0 0.0
    %212 = vmatpush1.xpose.msra.mxu0 0.0
    %213 = vmatprep.subr.mxu0 0.0
    %214 = vmatpush1.xpose.msra.mxu0 0.0
    %215 = vmatprep.subr.mxu0 0.0
    %216 = vmatpush1.xpose.msra.mxu0 0.0
    %217 = vmatprep.subr.mxu0 0.0
    %218 = vmatpush1.xpose.msra.mxu0 0.0
    %219 = vmatprep.subr.mxu0 0.0
    %220 = vmatpush1.xpose.msra.mxu0 0.0
    %221 = vmatprep.subr.mxu0 0.0
    %222 = vmatpush1.xpose.msra.mxu0 0.0
    %223 = vmatprep.subr.mxu0 0.0
    %224 = vmatpush1.xpose.msra.mxu0 0.0
    %225 = vmatprep.subr.mxu0 0.0
    %226 = vmatpush1.xpose.msra.mxu0 0.0
    %227 = vmatprep.subr.mxu0 0.0
    %228 = vmatpush1.xpose.msra.mxu0 0.0
    %229 = vmatprep.mubr.f32.mxu0 0.0
    %230 = vmatmul.mubr.f32.gmra.mrb[0].mxu0 %v157
    %v231 = vpop.f32.mrb[0].mxu0
    %v232 = vadd.f32 %v148, %v231
    %v233 = vpop.f32.mrb[0].mxu0
    %234 = vmatprep.mubr.f32.mxu0 0.0
    %235 = vmatmul.mubr.f32.gmra.mrb[0].mxu0 %v159
    %v236 = vpop.f32.mrb[0].mxu0
    %v237 = vadd.f32 %v149, %v236
    %v238 = vpop.f32.mrb[0].mxu0
    %239 = vdwg.mxu0
    %vm240 = vcmask 130048
    %v241 = vsel %vm240, %v232, -inf
    %242 = vmax.xlane.f32.xlu0 %v241
    %v243 = vpop.xlane.xlu0 %242
    %v244 = vsel %vm240, %v237, -inf
    %245 = vmax.xlane.f32.xlu0 %v244
    %v246 = vpop.xlane.xlu0 %245
    %v247 = vsub.f32 %v232, %v243
    %v248 = vsub.f32 %v237, %v246
    %v249 = vmul.f32 %v247, 1.442695
    %v250 = vpow.pop %v249
    %v251 = vmul.f32 %v248, 1.442695
    %v252 = vpow.pop %v251
    %v253 = vsel %vm240, %v250, 0.0
    %254 = vadd.xlane.f32.xlu0 %v253
    %v255 = vpop.xlane.xlu0 %254
    %v256 = vsel %vm240, %v252, 0.0
    %257 = vadd.xlane.f32.xlu0 %v256
    %v258 = vpop.xlane.xlu0 %257
    %259 = vrot.lane.b32.xlu0 %v130, 64
    %v260 = vpop.permute.xlu0 %259
    %261 = vrot.lane.b32.xlu0 %v135, 64
    %v262 = vpop.permute.xlu0 %261
    %v266 = vsel %vm240, %v250, 0
    %v269 = vsel %vm240, %v252, 0
    %271 = vmatprep.subr.mxu0 0.0
    %272 = vmatpush1.msra.mxu0 %v260
    %273 = vmatprep.subr.mxu0 0.0
    %274 = vmatpush1.msra.mxu0 %v262
    %275 = vmatprep.subr.mxu0 0.0
    %276 = vmatpush1.msra.mxu0 0.0
    %277 = vmatprep.subr.mxu0 0.0
    %278 = vmatpush1.msra.mxu0 0.0
    %279 = vmatprep.subr.mxu0 0.0
    %280 = vmatpush1.msra.mxu0 0.0
    %281 = vmatprep.subr.mxu0 0.0
    %282 = vmatpush1.msra.mxu0 0.0
    %283 = vmatprep.subr.mxu0 0.0
    %284 = vmatpush1.msra.mxu0 0.0
    %285 = vmatprep.subr.mxu0 0.0
    %286 = vmatpush1.msra.mxu0 0.0
    %287 = vmatprep.subr.mxu0 0.0
    %288 = vmatpush1.msra.mxu0 0.0
    %289 = vmatprep.subr.mxu0 0.0
    %290 = vmatpush1.msra.mxu0 0.0
    %291 = vmatprep.subr.mxu0 0.0
    %292 = vmatpush1.msra.mxu0 0.0
    %293 = vmatprep.subr.mxu0 0.0
    %294 = vmatpush1.msra.mxu0 0.0
    %295 = vmatprep.subr.mxu0 0.0
    %296 = vmatpush1.msra.mxu0 0.0
    %297 = vmatprep.subr.mxu0 0.0
    %298 = vmatpush1.msra.mxu0 0.0
    %299 = vmatprep.subr.mxu0 0.0
    %300 = vmatpush1.msra.mxu0 0.0
    %301 = vmatprep.subr.mxu0 0.0
    %302 = vmatpush1.msra.mxu0 0.0
    %303 = vmatprep.subr.mxu0 0.0
    %304 = vmatpush1.msra.mxu0 0.0
    %305 = vmatprep.subr.mxu0 0.0
    %306 = vmatpush1.msra.mxu0 0.0
    %307 = vmatprep.subr.mxu0 0.0
    %308 = vmatpush1.msra.mxu0 0.0
    %309 = vmatprep.subr.mxu0 0.0
    %310 = vmatpush1.msra.mxu0 0.0
    %311 = vmatprep.subr.mxu0 0.0
    %312 = vmatpush1.msra.mxu0 0.0
    %313 = vmatprep.subr.mxu0 0.0
    %314 = vmatpush1.msra.mxu0 0.0
    %315 = vmatprep.subr.mxu0 0.0
    %316 = vmatpush1.msra.mxu0 0.0
    %317 = vmatprep.subr.mxu0 0.0
    %318 = vmatpush1.msra.mxu0 0.0
    %319 = vmatprep.subr.mxu0 0.0
    %320 = vmatpush1.msra.mxu0 0.0
    %321 = vmatprep.subr.mxu0 0.0
    %322 = vmatpush1.msra.mxu0 0.0
    %323 = vmatprep.subr.mxu0 0.0
    %324 = vmatpush1.msra.mxu0 0.0
    %325 = vmatprep.subr.mxu0 0.0
    %326 = vmatpush1.msra.mxu0 0.0
    %327 = vmatprep.subr.mxu0 0.0
    %328 = vmatpush1.msra.mxu0 0.0
    %329 = vmatprep.subr.mxu0 0.0
    %330 = vmatpush1.msra.mxu0 0.0
    %331 = vmatprep.subr.mxu0 0.0
    %332 = vmatpush1.msra.mxu0 0.0
    %333 = vmatprep.subr.mxu0 0.0
    %334 = vmatpush1.msra.mxu0 0.0
    %335 = vmatprep.mubr.f32.mxu0 0.0
    %336 = vmatmul.mubr.f32.gmra.mrb[0].mxu0 %v266
    %v337 = vpop.f32.mrb[0].mxu0
    %v338 = vadd.f32 0.0, %v337
    %v339 = vpop.f32.mrb[0].mxu0
    %340 = vmatprep.mubr.f32.mxu0 0.0
    %341 = vmatmul.mubr.f32.gmra.mrb[0].mxu0 %v269
    %v342 = vpop.f32.mrb[0].mxu0
    %v343 = vadd.f32 0.0, %v342
    %v344 = vpop.f32.mrb[0].mxu0
    %345 = vdwg.mxu0
    %v346 = vrcp.pop %v255
    %v347 = vrcp.pop %v258
    %v348 = vmul.f32 %v255, %v346
    %v349 = vmul.f32 %v258, %v347
    %v350 = vsub.f32 2.0, %v348
    %v351 = vsub.f32 2.0, %v349
    %v352 = vmul.f32 %v346, %v350
    %v353 = vmul.f32 %v347, %v351
    %v354 = vmul.f32 %v338, %v352
    %v355 = vmul.f32 %v343, %v353
    %356 = vst.msk [vmem:[#allocation2] sm:$0xff] %vm156, %v354
    %357 = vst.msk [vmem:[#allocation2 + $0x8] sm:$0xff] %vm156, %v355
    %358 = vrot.lane.b32.xlu0 %v130, 120
    %v359 = vpop.permute.xlu0 %358
    %360 = vrot.lane.b32.xlu0 %v135, 120
    %v361 = vpop.permute.xlu0 %360
    %362 = vrot.lane.b32.xlu0 %v130, 88
    %v363 = vpop.permute.xlu0 %362
    %364 = vrot.lane.b32.xlu0 %v135, 88
    %v365 = vpop.permute.xlu0 %364
    %v366 = vsel %vm156, %v359, 0
    %v368 = vsel %vm156, %v361, 0
    %v370 = vsel %vm156, %v363, 0
    %v372 = vsel %vm156, %v365, 0
    %374 = vmatprep.subr.mxu0 0.0
    %375 = vmatpush1.xpose.msra.mxu0 %v370
    %376 = vmatprep.subr.mxu0 0.0
    %377 = vmatpush1.xpose.msra.mxu0 %v372
    %378 = vmatprep.subr.mxu0 0.0
    %379 = vmatpush1.xpose.msra.mxu0 0.0
    %380 = vmatprep.subr.mxu0 0.0
    %381 = vmatpush1.xpose.msra.mxu0 0.0
    %382 = vmatprep.subr.mxu0 0.0
    %383 = vmatpush1.xpose.msra.mxu0 0.0
    %384 = vmatprep.subr.mxu0 0.0
    %385 = vmatpush1.xpose.msra.mxu0 0.0
    %386 = vmatprep.subr.mxu0 0.0
    %387 = vmatpush1.xpose.msra.mxu0 0.0
    %388 = vmatprep.subr.mxu0 0.0
    %389 = vmatpush1.xpose.msra.mxu0 0.0
    %390 = vmatprep.subr.mxu0 0.0
    %391 = vmatpush1.xpose.msra.mxu0 0.0
    %392 = vmatprep.subr.mxu0 0.0
    %393 = vmatpush1.xpose.msra.mxu0 0.0
    %394 = vmatprep.subr.mxu0 0.0
    %395 = vmatpush1.xpose.msra.mxu0 0.0
    %396 = vmatprep.subr.mxu0 0.0
    %397 = vmatpush1.xpose.msra.mxu0 0.0
    %398 = vmatprep.subr.mxu0 0.0
    %399 = vmatpush1.xpose.msra.mxu0 0.0
    %400 = vmatprep.subr.mxu0 0.0
    %401 = vmatpush1.xpose.msra.mxu0 0.0
    %402 = vmatprep.subr.mxu0 0.0
    %403 = vmatpush1.xpose.msra.mxu0 0.0
    %404 = vmatprep.subr.mxu0 0.0
    %405 = vmatpush1.xpose.msra.mxu0 0.0
    %406 = vmatprep.subr.mxu0 0.0
    %407 = vmatpush1.xpose.msra.mxu0 0.0
    %408 = vmatprep.subr.mxu0 0.0
    %409 = vmatpush1.xpose.msra.mxu0 0.0
    %410 = vmatprep.subr.mxu0 0.0
    %411 = vmatpush1.xpose.msra.mxu0 0.0
    %412 = vmatprep.subr.mxu0 0.0
    %413 = vmatpush1.xpose.msra.mxu0 0.0
    %414 = vmatprep.subr.mxu0 0.0
    %415 = vmatpush1.xpose.msra.mxu0 0.0
    %416 = vmatprep.subr.mxu0 0.0
    %417 = vmatpush1.xpose.msra.mxu0 0.0
    %418 = vmatprep.subr.mxu0 0.0
    %419 = vmatpush1.xpose.msra.mxu0 0.0
    %420 = vmatprep.subr.mxu0 0.0
    %421 = vmatpush1.xpose.msra.mxu0 0.0
    %422 = vmatprep.subr.mxu0 0.0
    %423 = vmatpush1.xpose.msra.mxu0 0.0
    %424 = vmatprep.subr.mxu0 0.0
    %425 = vmatpush1.xpose.msra.mxu0 0.0
    %426 = vmatprep.subr.mxu0 0.0
    %427 = vmatpush1.xpose.msra.mxu0 0.0
    %428 = vmatprep.subr.mxu0 0.0
    %429 = vmatpush1.xpose.msra.mxu0 0.0
    %430 = vmatprep.subr.mxu0 0.0
    %431 = vmatpush1.xpose.msra.mxu0 0.0
    %432 = vmatprep.subr.mxu0 0.0
    %433 = vmatpush1.xpose.msra.mxu0 0.0
    %434 = vmatprep.subr.mxu0 0.0
    %435 = vmatpush1.xpose.msra.mxu0 0.0
    %436 = vmatprep.subr.mxu0 0.0
    %437 = vmatpush1.xpose.msra.mxu0 0.0
    %438 = vmatprep.mubr.f32.mxu0 0.0
    %439 = vmatmul.mubr.f32.gmra.mrb[0].mxu0 %v366
    %v440 = vpop.f32.mrb[0].mxu0
    %v441 = vadd.f32 %v148, %v440
    %v442 = vpop.f32.mrb[0].mxu0
    %443 = vmatprep.mubr.f32.mxu0 0.0
    %444 = vmatmul.mubr.f32.gmra.mrb[0].mxu0 %v368
    %v445 = vpop.f32.mrb[0].mxu0
    %v446 = vadd.f32 %v149, %v445
    %v447 = vpop.f32.mrb[0].mxu0
    %448 = vdwg.mxu0
    %v449 = vsel %vm240, %v441, -inf
    %450 = vmax.xlane.f32.xlu0 %v449
    %v451 = vpop.xlane.xlu0 %450
    %v452 = vsel %vm240, %v446, -inf
    %453 = vmax.xlane.f32.xlu0 %v452
    %v454 = vpop.xlane.xlu0 %453
    %v455 = vsub.f32 %v441, %v451
    %v456 = vsub.f32 %v446, %v454
    %v457 = vmul.f32 %v455, 1.442695
    %v458 = vpow.pop %v457
    %v459 = vmul.f32 %v456, 1.442695
    %v460 = vpow.pop %v459
    %v461 = vsel %vm240, %v458, 0.0
    %462 = vadd.xlane.f32.xlu0 %v461
    %v463 = vpop.xlane.xlu0 %462
    %v464 = vsel %vm240, %v460, 0.0
    %465 = vadd.xlane.f32.xlu0 %v464
    %v466 = vpop.xlane.xlu0 %465
    %467 = vrot.lane.b32.xlu0 %v130, 56
    %v468 = vpop.permute.xlu0 %467
    %469 = vrot.lane.b32.xlu0 %v135, 56
    %v470 = vpop.permute.xlu0 %469
    %v474 = vsel %vm240, %v458, 0
    %v477 = vsel %vm240, %v460, 0
    %479 = vmatprep.subr.mxu0 0.0
    %480 = vmatpush1.msra.mxu0 %v468
    %481 = vmatprep.subr.mxu0 0.0
    %482 = vmatpush1.msra.mxu0 %v470
    %483 = vmatprep.subr.mxu0 0.0
    %484 = vmatpush1.msra.mxu0 0.0
    %485 = vmatprep.subr.mxu0 0.0
    %486 = vmatpush1.msra.mxu0 0.0
    %487 = vmatprep.subr.mxu0 0.0
    %488 = vmatpush1.msra.mxu0 0.0
    %489 = vmatprep.subr.mxu0 0.0
    %490 = vmatpush1.msra.mxu0 0.0
    %491 = vmatprep.subr.mxu0 0.0
    %492 = vmatpush1.msra.mxu0 0.0
    %493 = vmatprep.subr.mxu0 0.0
    %494 = vmatpush1.msra.mxu0 0.0
    %495 = vmatprep.subr.mxu0 0.0
    %496 = vmatpush1.msra.mxu0 0.0
    %497 = vmatprep.subr.mxu0 0.0
    %498 = vmatpush1.msra.mxu0 0.0
    %499 = vmatprep.subr.mxu0 0.0
    %500 = vmatpush1.msra.mxu0 0.0
    %501 = vmatprep.subr.mxu0 0.0
    %502 = vmatpush1.msra.mxu0 0.0
    %503 = vmatprep.subr.mxu0 0.0
    %504 = vmatpush1.msra.mxu0 0.0
    %505 = vmatprep.subr.mxu0 0.0
    %506 = vmatpush1.msra.mxu0 0.0
    %507 = vmatprep.subr.mxu0 0.0
    %508 = vmatpush1.msra.mxu0 0.0
    %509 = vmatprep.subr.mxu0 0.0
    %510 = vmatpush1.msra.mxu0 0.0
    %511 = vmatprep.subr.mxu0 0.0
    %512 = vmatpush1.msra.mxu0 0.0
    %513 = vmatprep.subr.mxu0 0.0
    %514 = vmatpush1.msra.mxu0 0.0
    %515 = vmatprep.subr.mxu0 0.0
    %516 = vmatpush1.msra.mxu0 0.0
    %517 = vmatprep.subr.mxu0 0.0
    %518 = vmatpush1.msra.mxu0 0.0
    %519 = vmatprep.subr.mxu0 0.0
    %520 = vmatpush1.msra.mxu0 0.0
    %521 = vmatprep.subr.mxu0 0.0
    %522 = vmatpush1.msra.mxu0 0.0
    %523 = vmatprep.subr.mxu0 0.0
    %524 = vmatpush1.msra.mxu0 0.0
    %525 = vmatprep.subr.mxu0 0.0
    %526 = vmatpush1.msra.mxu0 0.0
    %527 = vmatprep.subr.mxu0 0.0
    %528 = vmatpush1.msra.mxu0 0.0
    %529 = vmatprep.subr.mxu0 0.0
    %530 = vmatpush1.msra.mxu0 0.0
    %531 = vmatprep.subr.mxu0 0.0
    %532 = vmatpush1.msra.mxu0 0.0
    %533 = vmatprep.subr.mxu0 0.0
    %534 = vmatpush1.msra.mxu0 0.0
    %535 = vmatprep.subr.mxu0 0.0
    %536 = vmatpush1.msra.mxu0 0.0
    %537 = vmatprep.subr.mxu0 0.0
    %538 = vmatpush1.msra.mxu0 0.0
    %539 = vmatprep.subr.mxu0 0.0
    %540 = vmatpush1.msra.mxu0 0.0
    %541 = vmatprep.subr.mxu0 0.0
    %542 = vmatpush1.msra.mxu0 0.0
    %543 = vmatprep.mubr.f32.mxu0 0.0
    %544 = vmatmul.mubr.f32.gmra.mrb[0].mxu0 %v474
    %v545 = vpop.f32.mrb[0].mxu0
    %v546 = vadd.f32 0.0, %v545
    %v547 = vpop.f32.mrb[0].mxu0
    %548 = vmatprep.mubr.f32.mxu0 0.0
    %549 = vmatmul.mubr.f32.gmra.mrb[0].mxu0 %v477
    %v550 = vpop.f32.mrb[0].mxu0
    %v551 = vadd.f32 0.0, %v550
    %v552 = vpop.f32.mrb[0].mxu0
    %553 = vdwg.mxu0
    %v554 = vrcp.pop %v463
    %v555 = vrcp.pop %v466
    %v556 = vmul.f32 %v463, %v554
    %v557 = vmul.f32 %v466, %v555
    %v558 = vsub.f32 2.0, %v556
    %v559 = vsub.f32 2.0, %v557
    %v560 = vmul.f32 %v554, %v558
    %v561 = vmul.f32 %v555, %v559
    %v562 = vmul.f32 %v546, %v560
    %v563 = vmul.f32 %v551, %v561
    %566 = vrot.lane.b32.xlu0 %v562, 8
    %v567 = vpop.permute.xlu0 %566
    %568 = vrot.lane.b32.xlu0 %v563, 8
    %v569 = vpop.permute.xlu0 %568
    %vm572 = vcmask 130112
    %573 = vst.msk [vmem:[#allocation2] sm:$0xff] %vm572, %v567
    %574 = vst.msk [vmem:[#allocation2 + $0x8] sm:$0xff] %vm572, %v569
    %575 = vrot.lane.b32.xlu0 %v130, 112
    %v576 = vpop.permute.xlu0 %575
    %577 = vrot.lane.b32.xlu0 %v135, 112
    %v578 = vpop.permute.xlu0 %577
    %579 = vrot.lane.b32.xlu0 %v130, 80
    %v580 = vpop.permute.xlu0 %579
    %581 = vrot.lane.b32.xlu0 %v135, 80
    %v582 = vpop.permute.xlu0 %581
    %v583 = vsel %vm156, %v576, 0
    %v585 = vsel %vm156, %v578, 0
    %v587 = vsel %vm156, %v580, 0
    %v589 = vsel %vm156, %v582, 0
    %591 = vmatprep.subr.mxu0 0.0
    %592 = vmatpush1.xpose.msra.mxu0 %v587
    %593 = vmatprep.subr.mxu0 0.0
    %594 = vmatpush1.xpose.msra.mxu0 %v589
    %595 = vmatprep.subr.mxu0 0.0
    %596 = vmatpush1.xpose.msra.mxu0 0.0
    %597 = vmatprep.subr.mxu0 0.0
    %598 = vmatpush1.xpose.msra.mxu0 0.0
    %599 = vmatprep.subr.mxu0 0.0
    %600 = vmatpush1.xpose.msra.mxu0 0.0
    %601 = vmatprep.subr.mxu0 0.0
    %602 = vmatpush1.xpose.msra.mxu0 0.0
    %603 = vmatprep.subr.mxu0 0.0
    %604 = vmatpush1.xpose.msra.mxu0 0.0
    %605 = vmatprep.subr.mxu0 0.0
    %606 = vmatpush1.xpose.msra.mxu0 0.0
    %607 = vmatprep.subr.mxu0 0.0
    %608 = vmatpush1.xpose.msra.mxu0 0.0
    %609 = vmatprep.subr.mxu0 0.0
    %610 = vmatpush1.xpose.msra.mxu0 0.0
    %611 = vmatprep.subr.mxu0 0.0
    %612 = vmatpush1.xpose.msra.mxu0 0.0
    %613 = vmatprep.subr.mxu0 0.0
    %614 = vmatpush1.xpose.msra.mxu0 0.0
    %615 = vmatprep.subr.mxu0 0.0
    %616 = vmatpush1.xpose.msra.mxu0 0.0
    %617 = vmatprep.subr.mxu0 0.0
    %618 = vmatpush1.xpose.msra.mxu0 0.0
    %619 = vmatprep.subr.mxu0 0.0
    %620 = vmatpush1.xpose.msra.mxu0 0.0
    %621 = vmatprep.subr.mxu0 0.0
    %622 = vmatpush1.xpose.msra.mxu0 0.0
    %623 = vmatprep.subr.mxu0 0.0
    %624 = vmatpush1.xpose.msra.mxu0 0.0
    %625 = vmatprep.subr.mxu0 0.0
    %626 = vmatpush1.xpose.msra.mxu0 0.0
    %627 = vmatprep.subr.mxu0 0.0
    %628 = vmatpush1.xpose.msra.mxu0 0.0
    %629 = vmatprep.subr.mxu0 0.0
    %630 = vmatpush1.xpose.msra.mxu0 0.0
    %631 = vmatprep.subr.mxu0 0.0
    %632 = vmatpush1.xpose.msra.mxu0 0.0
    %633 = vmatprep.subr.mxu0 0.0
    %634 = vmatpush1.xpose.msra.mxu0 0.0
    %635 = vmatprep.subr.mxu0 0.0
    %636 = vmatpush1.xpose.msra.mxu0 0.0
    %637 = vmatprep.subr.mxu0 0.0
    %638 = vmatpush1.xpose.msra.mxu0 0.0
    %639 = vmatprep.subr.mxu0 0.0
    %640 = vmatpush1.xpose.msra.mxu0 0.0
    %641 = vmatprep.subr.mxu0 0.0
    %642 = vmatpush1.xpose.msra.mxu0 0.0
    %643 = vmatprep.subr.mxu0 0.0
    %644 = vmatpush1.xpose.msra.mxu0 0.0
    %645 = vmatprep.subr.mxu0 0.0
    %646 = vmatpush1.xpose.msra.mxu0 0.0
    %647 = vmatprep.subr.mxu0 0.0
    %648 = vmatpush1.xpose.msra.mxu0 0.0
    %649 = vmatprep.subr.mxu0 0.0
    %650 = vmatpush1.xpose.msra.mxu0 0.0
    %651 = vmatprep.subr.mxu0 0.0
    %652 = vmatpush1.xpose.msra.mxu0 0.0
    %653 = vmatprep.subr.mxu0 0.0
    %654 = vmatpush1.xpose.msra.mxu0 0.0
    %655 = vmatprep.mubr.f32.mxu0 0.0
    %656 = vmatmul.mubr.f32.gmra.mrb[0].mxu0 %v583
    %v657 = vpop.f32.mrb[0].mxu0
    %v658 = vadd.f32 %v148, %v657
    %v659 = vpop.f32.mrb[0].mxu0
    %660 = vmatprep.mubr.f32.mxu0 0.0
    %661 = vmatmul.mubr.f32.gmra.mrb[0].mxu0 %v585
    %v662 = vpop.f32.mrb[0].mxu0
    %v663 = vadd.f32 %v149, %v662
    %v664 = vpop.f32.mrb[0].mxu0
    %665 = vdwg.mxu0
    %v666 = vsel %vm240, %v658, -inf
    %667 = vmax.xlane.f32.xlu0 %v666
    %v668 = vpop.xlane.xlu0 %667
    %v669 = vsel %vm240, %v663, -inf
    %670 = vmax.xlane.f32.xlu0 %v669
    %v671 = vpop.xlane.xlu0 %670
    %v672 = vsub.f32 %v658, %v668
    %v673 = vsub.f32 %v663, %v671
    %v674 = vmul.f32 %v672, 1.442695
    %v675 = vpow.pop %v674
    %v676 = vmul.f32 %v673, 1.442695
    %v677 = vpow.pop %v676
    %v678 = vsel %vm240, %v675, 0.0
    %679 = vadd.xlane.f32.xlu0 %v678
    %v680 = vpop.xlane.xlu0 %679
    %v681 = vsel %vm240, %v677, 0.0
    %682 = vadd.xlane.f32.xlu0 %v681
    %v683 = vpop.xlane.xlu0 %682
    %684 = vrot.lane.b32.xlu0 %v130, 48
    %v685 = vpop.permute.xlu0 %684
    %686 = vrot.lane.b32.xlu0 %v135, 48
    %v687 = vpop.permute.xlu0 %686
    %v691 = vsel %vm240, %v675, 0
    %v694 = vsel %vm240, %v677, 0
    %696 = vmatprep.subr.mxu0 0.0
    %697 = vmatpush1.msra.mxu0 %v685
    %698 = vmatprep.subr.mxu0 0.0
    %699 = vmatpush1.msra.mxu0 %v687
    %700 = vmatprep.subr.mxu0 0.0
    %701 = vmatpush1.msra.mxu0 0.0
    %702 = vmatprep.subr.mxu0 0.0
    %703 = vmatpush1.msra.mxu0 0.0
    %704 = vmatprep.subr.mxu0 0.0
    %705 = vmatpush1.msra.mxu0 0.0
    %706 = vmatprep.subr.mxu0 0.0
    %707 = vmatpush1.msra.mxu0 0.0
    %708 = vmatprep.subr.mxu0 0.0
    %709 = vmatpush1.msra.mxu0 0.0
    %710 = vmatprep.subr.mxu0 0.0
    %711 = vmatpush1.msra.mxu0 0.0
    %712 = vmatprep.subr.mxu0 0.0
    %713 = vmatpush1.msra.mxu0 0.0
    %714 = vmatprep.subr.mxu0 0.0
    %715 = vmatpush1.msra.mxu0 0.0
    %716 = vmatprep.subr.mxu0 0.0
    %717 = vmatpush1.msra.mxu0 0.0
    %718 = vmatprep.subr.mxu0 0.0
    %719 = vmatpush1.msra.mxu0 0.0
    %720 = vmatprep.subr.mxu0 0.0
    %721 = vmatpush1.msra.mxu0 0.0
    %722 = vmatprep.subr.mxu0 0.0
    %723 = vmatpush1.msra.mxu0 0.0
    %724 = vmatprep.subr.mxu0 0.0
    %725 = vmatpush1.msra.mxu0 0.0
    %726 = vmatprep.subr.mxu0 0.0
    %727 = vmatpush1.msra.mxu0 0.0
    %728 = vmatprep.subr.mxu0 0.0
    %729 = vmatpush1.msra.mxu0 0.0
    %730 = vmatprep.subr.mxu0 0.0
    %731 = vmatpush1.msra.mxu0 0.0
    %732 = vmatprep.subr.mxu0 0.0
    %733 = vmatpush1.msra.mxu0 0.0
    %734 = vmatprep.subr.mxu0 0.0
    %735 = vmatpush1.msra.mxu0 0.0
    %736 = vmatprep.subr.mxu0 0.0
    %737 = vmatpush1.msra.mxu0 0.0
    %738 = vmatprep.subr.mxu0 0.0
    %739 = vmatpush1.msra.mxu0 0.0
    %740 = vmatprep.subr.mxu0 0.0
    %741 = vmatpush1.msra.mxu0 0.0
    %742 = vmatprep.subr.mxu0 0.0
    %743 = vmatpush1.msra.mxu0 0.0
    %744 = vmatprep.subr.mxu0 0.0
    %745 = vmatpush1.msra.mxu0 0.0
    %746 = vmatprep.subr.mxu0 0.0
    %747 = vmatpush1.msra.mxu0 0.0
    %748 = vmatprep.subr.mxu0 0.0
    %749 = vmatpush1.msra.mxu0 0.0
    %750 = vmatprep.subr.mxu0 0.0
    %751 = vmatpush1.msra.mxu0 0.0
    %752 = vmatprep.subr.mxu0 0.0
    %753 = vmatpush1.msra.mxu0 0.0
    %754 = vmatprep.subr.mxu0 0.0
    %755 = vmatpush1.msra.mxu0 0.0
    %756 = vmatprep.subr.mxu0 0.0
    %757 = vmatpush1.msra.mxu0 0.0
    %758 = vmatprep.subr.mxu0 0.0
    %759 = vmatpush1.msra.mxu0 0.0
    %760 = vmatprep.mubr.f32.mxu0 0.0
    %761 = vmatmul.mubr.f32.gmra.mrb[0].mxu0 %v691
    %v762 = vpop.f32.mrb[0].mxu0
    %v763 = vadd.f32 0.0, %v762
    %v764 = vpop.f32.mrb[0].mxu0
    %765 = vmatprep.mubr.f32.mxu0 0.0
    %766 = vmatmul.mubr.f32.gmra.mrb[0].mxu0 %v694
    %v767 = vpop.f32.mrb[0].mxu0
    %v768 = vadd.f32 0.0, %v767
    %v769 = vpop.f32.mrb[0].mxu0
    %770 = vdwg.mxu0
    %v771 = vrcp.pop %v680
    %v772 = vrcp.pop %v683
    %v773 = vmul.f32 %v680, %v771
    %v774 = vmul.f32 %v683, %v772
    %v775 = vsub.f32 2.0, %v773
    %v776 = vsub.f32 2.0, %v774
    %v777 = vmul.f32 %v771, %v775
    %v778 = vmul.f32 %v772, %v776
    %v779 = vmul.f32 %v763, %v777
    %v780 = vmul.f32 %v768, %v778
    %783 = vrot.lane.b32.xlu0 %v779, 16
    %v784 = vpop.permute.xlu0 %783
    %785 = vrot.lane.b32.xlu0 %v780, 16
    %v786 = vpop.permute.xlu0 %785
    %vm789 = vcmask 195712
    %790 = vst.msk [vmem:[#allocation2] sm:$0xff] %vm789, %v784
    %791 = vst.msk [vmem:[#allocation2 + $0x8] sm:$0xff] %vm789, %v786
    %792 = vrot.lane.b32.xlu0 %v130, 104
    %v793 = vpop.permute.xlu0 %792
    %794 = vrot.lane.b32.xlu0 %v135, 104
    %v795 = vpop.permute.xlu0 %794
    %796 = vrot.lane.b32.xlu0 %v130, 72
    %v797 = vpop.permute.xlu0 %796
    %798 = vrot.lane.b32.xlu0 %v135, 72
    %v799 = vpop.permute.xlu0 %798
    %v800 = vsel %vm156, %v793, 0
    %v802 = vsel %vm156, %v795, 0
    %v804 = vsel %vm156, %v797, 0
    %v806 = vsel %vm156, %v799, 0
    %808 = vmatprep.subr.mxu0 0.0
    %809 = vmatpush1.xpose.msra.mxu0 %v804
    %810 = vmatprep.subr.mxu0 0.0
    %811 = vmatpush1.xpose.msra.mxu0 %v806
    %812 = vmatprep.subr.mxu0 0.0
    %813 = vmatpush1.xpose.msra.mxu0 0.0
    %814 = vmatprep.subr.mxu0 0.0
    %815 = vmatpush1.xpose.msra.mxu0 0.0
    %816 = vmatprep.subr.mxu0 0.0
    %817 = vmatpush1.xpose.msra.mxu0 0.0
    %818 = vmatprep.subr.mxu0 0.0
    %819 = vmatpush1.xpose.msra.mxu0 0.0
    %820 = vmatprep.subr.mxu0 0.0
    %821 = vmatpush1.xpose.msra.mxu0 0.0
    %822 = vmatprep.subr.mxu0 0.0
    %823 = vmatpush1.xpose.msra.mxu0 0.0
    %824 = vmatprep.subr.mxu0 0.0
    %825 = vmatpush1.xpose.msra.mxu0 0.0
    %826 = vmatprep.subr.mxu0 0.0
    %827 = vmatpush1.xpose.msra.mxu0 0.0
    %828 = vmatprep.subr.mxu0 0.0
    %829 = vmatpush1.xpose.msra.mxu0 0.0
    %830 = vmatprep.subr.mxu0 0.0
    %831 = vmatpush1.xpose.msra.mxu0 0.0
    %832 = vmatprep.subr.mxu0 0.0
    %833 = vmatpush1.xpose.msra.mxu0 0.0
    %834 = vmatprep.subr.mxu0 0.0
    %835 = vmatpush1.xpose.msra.mxu0 0.0
    %836 = vmatprep.subr.mxu0 0.0
    %837 = vmatpush1.xpose.msra.mxu0 0.0
    %838 = vmatprep.subr.mxu0 0.0
    %839 = vmatpush1.xpose.msra.mxu0 0.0
    %840 = vmatprep.subr.mxu0 0.0
    %841 = vmatpush1.xpose.msra.mxu0 0.0
    %842 = vmatprep.subr.mxu0 0.0
    %843 = vmatpush1.xpose.msra.mxu0 0.0
    %844 = vmatprep.subr.mxu0 0.0
    %845 = vmatpush1.xpose.msra.mxu0 0.0
    %846 = vmatprep.subr.mxu0 0.0
    %847 = vmatpush1.xpose.msra.mxu0 0.0
    %848 = vmatprep.subr.mxu0 0.0
    %849 = vmatpush1.xpose.msra.mxu0 0.0
    %850 = vmatprep.subr.mxu0 0.0
    %851 = vmatpush1.xpose.msra.mxu0 0.0
    %852 = vmatprep.subr.mxu0 0.0
    %853 = vmatpush1.xpose.msra.mxu0 0.0
    %854 = vmatprep.subr.mxu0 0.0
    %855 = vmatpush1.xpose.msra.mxu0 0.0
    %856 = vmatprep.subr.mxu0 0.0
    %857 = vmatpush1.xpose.msra.mxu0 0.0
    %858 = vmatprep.subr.mxu0 0.0
    %859 = vmatpush1.xpose.msra.mxu0 0.0
    %860 = vmatprep.subr.mxu0 0.0
    %861 = vmatpush1.xpose.msra.mxu0 0.0
    %862 = vmatprep.subr.mxu0 0.0
    %863 = vmatpush1.xpose.msra.mxu0 0.0
    %864 = vmatprep.subr.mxu0 0.0
    %865 = vmatpush1.xpose.msra.mxu0 0.0
    %866 = vmatprep.subr.mxu0 0.0
    %867 = vmatpush1.xpose.msra.mxu0 0.0
    %868 = vmatprep.subr.mxu0 0.0
    %869 = vmatpush1.xpose.msra.mxu0 0.0
    %870 = vmatprep.subr.mxu0 0.0
    %871 = vmatpush1.xpose.msra.mxu0 0.0
    %872 = vmatprep.mubr.f32.mxu0 0.0
    %873 = vmatmul.mubr.f32.gmra.mrb[0].mxu0 %v800
    %v874 = vpop.f32.mrb[0].mxu0
    %v875 = vadd.f32 %v148, %v874
    %v876 = vpop.f32.mrb[0].mxu0
    %877 = vmatprep.mubr.f32.mxu0 0.0
    %878 = vmatmul.mubr.f32.gmra.mrb[0].mxu0 %v802
    %v879 = vpop.f32.mrb[0].mxu0
    %v880 = vadd.f32 %v149, %v879
    %v881 = vpop.f32.mrb[0].mxu0
    %882 = vdwg.mxu0
    %v883 = vsel %vm240, %v875, -inf
    %884 = vmax.xlane.f32.xlu0 %v883
    %v885 = vpop.xlane.xlu0 %884
    %v886 = vsel %vm240, %v880, -inf
    %887 = vmax.xlane.f32.xlu0 %v886
    %v888 = vpop.xlane.xlu0 %887
    %v889 = vsub.f32 %v875, %v885
    %v890 = vsub.f32 %v880, %v888
    %v891 = vmul.f32 %v889, 1.442695
    %v892 = vpow.pop %v891
    %v893 = vmul.f32 %v890, 1.442695
    %v894 = vpow.pop %v893
    %v895 = vsel %vm240, %v892, 0.0
    %896 = vadd.xlane.f32.xlu0 %v895
    %v897 = vpop.xlane.xlu0 %896
    %v898 = vsel %vm240, %v894, 0.0
    %899 = vadd.xlane.f32.xlu0 %v898
    %v900 = vpop.xlane.xlu0 %899
    %901 = vrot.lane.b32.xlu0 %v130, 40
    %v902 = vpop.permute.xlu0 %901
    %903 = vrot.lane.b32.xlu0 %v135, 40
    %v904 = vpop.permute.xlu0 %903
    %v908 = vsel %vm240, %v892, 0
    %v911 = vsel %vm240, %v894, 0
    %913 = vmatprep.subr.mxu0 0.0
    %914 = vmatpush1.msra.mxu0 %v902
    %915 = vmatprep.subr.mxu0 0.0
    %916 = vmatpush1.msra.mxu0 %v904
    %917 = vmatprep.subr.mxu0 0.0
    %918 = vmatpush1.msra.mxu0 0.0
    %919 = vmatprep.subr.mxu0 0.0
    %920 = vmatpush1.msra.mxu0 0.0
    %921 = vmatprep.subr.mxu0 0.0
    %922 = vmatpush1.msra.mxu0 0.0
    %923 = vmatprep.subr.mxu0 0.0
    %924 = vmatpush1.msra.mxu0 0.0
    %925 = vmatprep.subr.mxu0 0.0
    %926 = vmatpush1.msra.mxu0 0.0
    %927 = vmatprep.subr.mxu0 0.0
    %928 = vmatpush1.msra.mxu0 0.0
    %929 = vmatprep.subr.mxu0 0.0
    %930 = vmatpush1.msra.mxu0 0.0
    %931 = vmatprep.subr.mxu0 0.0
    %932 = vmatpush1.msra.mxu0 0.0
    %933 = vmatprep.subr.mxu0 0.0
    %934 = vmatpush1.msra.mxu0 0.0
    %935 = vmatprep.subr.mxu0 0.0
    %936 = vmatpush1.msra.mxu0 0.0
    %937 = vmatprep.subr.mxu0 0.0
    %938 = vmatpush1.msra.mxu0 0.0
    %939 = vmatprep.subr.mxu0 0.0
    %940 = vmatpush1.msra.mxu0 0.0
    %941 = vmatprep.subr.mxu0 0.0
    %942 = vmatpush1.msra.mxu0 0.0
    %943 = vmatprep.subr.mxu0 0.0
    %944 = vmatpush1.msra.mxu0 0.0
    %945 = vmatprep.subr.mxu0 0.0
    %946 = vmatpush1.msra.mxu0 0.0
    %947 = vmatprep.subr.mxu0 0.0
    %948 = vmatpush1.msra.mxu0 0.0
    %949 = vmatprep.subr.mxu0 0.0
    %950 = vmatpush1.msra.mxu0 0.0
    %951 = vmatprep.subr.mxu0 0.0
    %952 = vmatpush1.msra.mxu0 0.0
    %953 = vmatprep.subr.mxu0 0.0
    %954 = vmatpush1.msra.mxu0 0.0
    %955 = vmatprep.subr.mxu0 0.0
    %956 = vmatpush1.msra.mxu0 0.0
    %957 = vmatprep.subr.mxu0 0.0
    %958 = vmatpush1.msra.mxu0 0.0
    %959 = vmatprep.subr.mxu0 0.0
    %960 = vmatpush1.msra.mxu0 0.0
    %961 = vmatprep.subr.mxu0 0.0
    %962 = vmatpush1.msra.mxu0 0.0
    %963 = vmatprep.subr.mxu0 0.0
    %964 = vmatpush1.msra.mxu0 0.0
    %965 = vmatprep.subr.mxu0 0.0
    %966 = vmatpush1.msra.mxu0 0.0
    %967 = vmatprep.subr.mxu0 0.0
    %968 = vmatpush1.msra.mxu0 0.0
    %969 = vmatprep.subr.mxu0 0.0
    %970 = vmatpush1.msra.mxu0 0.0
    %971 = vmatprep.subr.mxu0 0.0
    %972 = vmatpush1.msra.mxu0 0.0
    %973 = vmatprep.subr.mxu0 0.0
    %974 = vmatpush1.msra.mxu0 0.0
    %975 = vmatprep.subr.mxu0 0.0
    %976 = vmatpush1.msra.mxu0 0.0
    %977 = vmatprep.mubr.f32.mxu0 0.0
    %978 = vmatmul.mubr.f32.gmra.mrb[0].mxu0 %v908
    %v979 = vpop.f32.mrb[0].mxu0
    %v980 = vadd.f32 0.0, %v979
    %v981 = vpop.f32.mrb[0].mxu0
    %982 = vmatprep.mubr.f32.mxu0 0.0
    %983 = vmatmul.mubr.f32.gmra.mrb[0].mxu0 %v911
    %v984 = vpop.f32.mrb[0].mxu0
    %v985 = vadd.f32 0.0, %v984
    %v986 = vpop.f32.mrb[0].mxu0
    %987 = vdwg.mxu0
    %v988 = vrcp.pop %v897
    %v989 = vrcp.pop %v900
    %v990 = vmul.f32 %v897, %v988
    %v991 = vmul.f32 %v900, %v989
    %v992 = vsub.f32 2.0, %v990
    %v993 = vsub.f32 2.0, %v991
    %v994 = vmul.f32 %v988, %v992
    %v995 = vmul.f32 %v989, %v993
    %v996 = vmul.f32 %v980, %v994
    %v997 = vmul.f32 %v985, %v995
    %1000 = vrot.lane.b32.xlu0 %v996, 24
    %v1001 = vpop.permute.xlu0 %1000
    %1002 = vrot.lane.b32.xlu0 %v997, 24
    %v1003 = vpop.permute.xlu0 %1002
    %vm1006 = vcmask 261312
    %1007 = vst.msk [vmem:[#allocation2] sm:$0xff] %vm1006, %v1001
    %1008 = vst.msk [vmem:[#allocation2 + $0x8] sm:$0xff] %vm1006, %v1003
    %v1009 = vld [vmem:[#allocation2] sm:$0xff]
    %v1010 = vld [vmem:[#allocation2 + $0x8] sm:$0xff]
    %v1011 = vld [vmem:[%s2] sm:$0xff]
    %v1012 = vld [vmem:[%s2 + $0x8] sm:$0xff]
    %v1013 = vld [vmem:[%s2 + $0x10] sm:$0xff]
    %v1014 = vld [vmem:[%s2 + $0x18] sm:$0xff]
    %v1015 = vlaneseq
    %v1016 = vshrl.u32 %v1015, 7
    %v1017 = vsub.s32 0, %v1016
    %v1018 = vrot.slane %v39, %v1017
    %v1020 = vsel %vm56, %v1009, 0
    %v1023 = vsel %vm56, %v1010, 0
    %1025 = vmatprep.subr.mxu0 0.0
    %1026 = vmatpush1.msra.mxu0 %v1011
    %1027 = vmatprep.subr.mxu0 0.0
    %1028 = vmatpush1.msra.mxu0 %v1012
    %1029 = vmatprep.subr.mxu0 0.0
    %1030 = vmatpush1.msra.mxu0 %v1013
    %1031 = vmatprep.subr.mxu0 0.0
    %1032 = vmatpush1.msra.mxu0 %v1014
    %1033 = vmatprep.subr.mxu0 0.0
    %1034 = vmatpush1.msra.mxu0 0.0
    %1035 = vmatprep.subr.mxu0 0.0
    %1036 = vmatpush1.msra.mxu0 0.0
    %1037 = vmatprep.subr.mxu0 0.0
    %1038 = vmatpush1.msra.mxu0 0.0
    %1039 = vmatprep.subr.mxu0 0.0
    %1040 = vmatpush1.msra.mxu0 0.0
    %1041 = vmatprep.subr.mxu0 0.0
    %1042 = vmatpush1.msra.mxu0 0.0
    %1043 = vmatprep.subr.mxu0 0.0
    %1044 = vmatpush1.msra.mxu0 0.0
    %1045 = vmatprep.subr.mxu0 0.0
    %1046 = vmatpush1.msra.mxu0 0.0
    %1047 = vmatprep.subr.mxu0 0.0
    %1048 = vmatpush1.msra.mxu0 0.0
    %1049 = vmatprep.subr.mxu0 0.0
    %1050 = vmatpush1.msra.mxu0 0.0
    %1051 = vmatprep.subr.mxu0 0.0
    %1052 = vmatpush1.msra.mxu0 0.0
    %1053 = vmatprep.subr.mxu0 0.0
    %1054 = vmatpush1.msra.mxu0 0.0
    %1055 = vmatprep.subr.mxu0 0.0
    %1056 = vmatpush1.msra.mxu0 0.0
    %1057 = vmatprep.subr.mxu0 0.0
    %1058 = vmatpush1.msra.mxu0 0.0
    %1059 = vmatprep.subr.mxu0 0.0
    %1060 = vmatpush1.msra.mxu0 0.0
    %1061 = vmatprep.subr.mxu0 0.0
    %1062 = vmatpush1.msra.mxu0 0.0
    %1063 = vmatprep.subr.mxu0 0.0
    %1064 = vmatpush1.msra.mxu0 0.0
    %1065 = vmatprep.subr.mxu0 0.0
    %1066 = vmatpush1.msra.mxu0 0.0
    %1067 = vmatprep.subr.mxu0 0.0
    %1068 = vmatpush1.msra.mxu0 0.0
    %1069 = vmatprep.subr.mxu0 0.0
    %1070 = vmatpush1.msra.mxu0 0.0
    %1071 = vmatprep.subr.mxu0 0.0
    %1072 = vmatpush1.msra.mxu0 0.0
    %1073 = vmatprep.subr.mxu0 0.0
    %1074 = vmatpush1.msra.mxu0 0.0
    %1075 = vmatprep.subr.mxu0 0.0
    %1076 = vmatpush1.msra.mxu0 0.0
    %1077 = vmatprep.subr.mxu0 0.0
    %1078 = vmatpush1.msra.mxu0 0.0
    %1079 = vmatprep.subr.mxu0 0.0
    %1080 = vmatpush1.msra.mxu0 0.0
    %1081 = vmatprep.subr.mxu0 0.0
    %1082 = vmatpush1.msra.mxu0 0.0
    %1083 = vmatprep.subr.mxu0 0.0
    %1084 = vmatpush1.msra.mxu0 0.0
    %1085 = vmatprep.subr.mxu0 0.0
    %1086 = vmatpush1.msra.mxu0 0.0
    %1087 = vmatprep.subr.mxu0 0.0
    %1088 = vmatpush1.msra.mxu0 0.0
    %1089 = vmatprep.mubr.f32.mxu0 0.0
    %1090 = vmatmul.mubr.f32.gmra.mrb[0].mxu0 %v1020
    %v1091 = vpop.f32.mrb[0].mxu0
    %v1092 = vadd.f32 %v1018, %v1091
    %v1093 = vpop.f32.mrb[0].mxu0
    %1094 = vmatprep.mubr.f32.mxu0 0.0
    %1095 = vmatmul.mubr.f32.gmra.mrb[0].mxu0 %v1023
    %v1096 = vpop.f32.mrb[0].mxu0
    %v1097 = vadd.f32 %v1018, %v1096
    %v1098 = vpop.f32.mrb[0].mxu0
    %1099 = vdwg.mxu0
    %v1100 = vadd.f32 %v46, %v1092
    %v1101 = vadd.f32 %v47, %v1097
    %v1102 = vsel %vm56, %v1100, 0.0
    %1103 = vadd.xlane.f32.xlu0 %v1102
    %v1104 = vpop.xlane.xlu0 %1103
    %v1105 = vsel %vm56, %v1101, 0.0
    %1106 = vadd.xlane.f32.xlu0 %v1105
    %v1107 = vpop.xlane.xlu0 %1106
    %v1108 = vrcp.pop 32.0
    %v1109 = vmul.f32 %v1104, %v1108
    %v1110 = vmul.f32 %v1107, %v1108
    %v1111 = vmul.f32 %v1100, %v1100
    %v1112 = vmul.f32 %v1101, %v1101
    %v1113 = vsel %vm56, %v1111, 0.0
    %1114 = vadd.xlane.f32.xlu0 %v1113
    %v1115 = vpop.xlane.xlu0 %1114
    %v1116 = vsel %vm56, %v1112, 0.0
    %1117 = vadd.xlane.f32.xlu0 %v1116
    %v1118 = vpop.xlane.xlu0 %1117
    %v1119 = vmul.f32 %v1115, %v1108
    %v1120 = vmul.f32 %v1118, %v1108
    %v1121 = vmul.f32 %v1109, %v1109
    %v1122 = vmul.f32 %v1110, %v1110
    %v1123 = vsub.f32 %v1119, %v1121
    %v1124 = vsub.f32 %v1120, %v1122
    %v1125 = vadd.f32 %v1123, 1e-05
    %v1126 = vadd.f32 %v1124, 1e-05
    %v1127 = vrsqrt.pop %v1125
    %v1128 = vrsqrt.pop %v1126
    %v1129 = vsub.f32 %v1100, %v1109
    %v1130 = vsub.f32 %v1101, %v1110
    %v1131 = vmul.f32 %v1129, %v1127
    %v1132 = vmul.f32 %v1130, %v1128
    %v1133 = vlaneseq
    %v1134 = vshrl.u32 %v1133, 7
    %v1135 = vsub.s32 0, %v1134
    %v1136 = vrot.slane %v40, %v1135
    %v1137 = vmul.f32 %v1131, %v1136
    %v1138 = vmul.f32 %v1132, %v1136
    %v1139 = vlaneseq
    %v1140 = vshrl.u32 %v1139, 7
    %v1141 = vsub.s32 0, %v1140
    %v1142 = vrot.slane %v41, %v1141
    %v1143 = vadd.f32 %v1137, %v1142
    %v1144 = vadd.f32 %v1138, %v1142
    %v1145 = vld [vmem:[%s3] sm:$0xff]
    %v1146 = vld [vmem:[%s3 + $0x8] sm:$0xff]
    %v1147 = vld [vmem:[%s3 + $0x10] sm:$0xff]
    %v1148 = vld [vmem:[%s3 + $0x18] sm:$0xff]
    %v1149 = vlaneseq
    %v1150 = vshrl.u32 %v1149, 7
    %v1151 = vsub.s32 0, %v1150
    %v1152 = vrot.slane %v42, %v1151
    %v1154 = vsel %vm56, %v1143, 0
    %v1157 = vsel %vm56, %v1144, 0
    %1159 = vmatprep.subr.mxu0 0.0
    %1160 = vmatpush1.msra.mxu0 %v1145
    %1161 = vmatprep.subr.mxu0 0.0
    %1162 = vmatpush1.msra.mxu0 %v1146
    %1163 = vmatprep.subr.mxu0 0.0
    %1164 = vmatpush1.msra.mxu0 %v1147
    %1165 = vmatprep.subr.mxu0 0.0
    %1166 = vmatpush1.msra.mxu0 %v1148
    %1167 = vmatprep.subr.mxu0 0.0
    %1168 = vmatpush1.msra.mxu0 0.0
    %1169 = vmatprep.subr.mxu0 0.0
    %1170 = vmatpush1.msra.mxu0 0.0
    %1171 = vmatprep.subr.mxu0 0.0
    %1172 = vmatpush1.msra.mxu0 0.0
    %1173 = vmatprep.subr.mxu0 0.0
    %1174 = vmatpush1.msra.mxu0 0.0
    %1175 = vmatprep.subr.mxu0 0.0
    %1176 = vmatpush1.msra.mxu0 0.0
    %1177 = vmatprep.subr.mxu0 0.0
    %1178 = vmatpush1.msra.mxu0 0.0
    %1179 = vmatprep.subr.mxu0 0.0
    %1180 = vmatpush1.msra.mxu0 0.0
    %1181 = vmatprep.subr.mxu0 0.0
    %1182 = vmatpush1.msra.mxu0 0.0
    %1183 = vmatprep.subr.mxu0 0.0
    %1184 = vmatpush1.msra.mxu0 0.0
    %1185 = vmatprep.subr.mxu0 0.0
    %1186 = vmatpush1.msra.mxu0 0.0
    %1187 = vmatprep.subr.mxu0 0.0
    %1188 = vmatpush1.msra.mxu0 0.0
    %1189 = vmatprep.subr.mxu0 0.0
    %1190 = vmatpush1.msra.mxu0 0.0
    %1191 = vmatprep.subr.mxu0 0.0
    %1192 = vmatpush1.msra.mxu0 0.0
    %1193 = vmatprep.subr.mxu0 0.0
    %1194 = vmatpush1.msra.mxu0 0.0
    %1195 = vmatprep.subr.mxu0 0.0
    %1196 = vmatpush1.msra.mxu0 0.0
    %1197 = vmatprep.subr.mxu0 0.0
    %1198 = vmatpush1.msra.mxu0 0.0
    %1199 = vmatprep.subr.mxu0 0.0
    %1200 = vmatpush1.msra.mxu0 0.0
    %1201 = vmatprep.subr.mxu0 0.0
    %1202 = vmatpush1.msra.mxu0 0.0
    %1203 = vmatprep.subr.mxu0 0.0
    %1204 = vmatpush1.msra.mxu0 0.0
    %1205 = vmatprep.subr.mxu0 0.0
    %1206 = vmatpush1.msra.mxu0 0.0
    %1207 = vmatprep.subr.mxu0 0.0
    %1208 = vmatpush1.msra.mxu0 0.0
    %1209 = vmatprep.subr.mxu0 0.0
    %1210 = vmatpush1.msra.mxu0 0.0
    %1211 = vmatprep.subr.mxu0 0.0
    %1212 = vmatpush1.msra.mxu0 0.0
    %1213 = vmatprep.subr.mxu0 0.0
    %1214 = vmatpush1.msra.mxu0 0.0
    %1215 = vmatprep.subr.mxu0 0.0
    %1216 = vmatpush1.msra.mxu0 0.0
    %1217 = vmatprep.subr.mxu0 0.0
    %1218 = vmatpush1.msra.mxu0 0.0
    %1219 = vmatprep.subr.mxu0 0.0
    %1220 = vmatpush1.msra.mxu0 0.0
    %1221 = vmatprep.subr.mxu0 0.0
    %1222 = vmatpush1.msra.mxu0 0.0
    %1223 = vmatprep.mubr.f32.mxu0 0.0
    %1224 = vmatmul.mubr.f32.gmra.mrb[0].mxu0 %v1154
    %v1225 = vpop.f32.mrb[0].mxu0
    %v1226 = vadd.f32 %v1152, %v1225
    %v1227 = vpop.f32.mrb[0].mxu0
    %1228 = vmatprep.mubr.f32.mxu0 0.0
    %1229 = vmatmul.mubr.f32.gmra.mrb[0].mxu0 %v1157
    %v1230 = vpop.f32.mrb[0].mxu0
    %v1231 = vadd.f32 %v1152, %v1230
    %v1232 = vpop.f32.mrb[0].mxu0
    %1233 = vdwg.mxu0
    %v1234 = vmax.f32 %v1226, 0.0
    %v1235 = vmax.f32 %v1231, 0.0
    %v1236 = vld [vmem:[%s4] sm:$0xff]
    %v1237 = vld [vmem:[%s4 + $0x8] sm:$0xff]
    %v1238 = vld [vmem:[%s4 + $0x10] sm:$0xff]
    %v1239 = vld [vmem:[%s4 + $0x18] sm:$0xff]
    %v1240 = vld [vmem:[%s4 + $0x20] sm:$0xff]
    %v1241 = vld [vmem:[%s4 + $0x28] sm:$0xff]
    %v1242 = vld [vmem:[%s4 + $0x30] sm:$0xff]
    %v1243 = vld [vmem:[%s4 + $0x38] sm:$0xff]
    %v1244 = vlaneseq
    %v1245 = vshrl.u32 %v1244, 7
    %v1246 = vsub.s32 0, %v1245
    %v1247 = vrot.slane %v43, %v1246
    %vm1248 = vcmask 523264
    %v1250 = vsel %vm1248, %v1234, 0
    %v1253 = vsel %vm1248, %v1235, 0
    %1255 = vmatprep.subr.mxu0 0.0
    %1256 = vmatpush1.msra.mxu0 %v1236
    %1257 = vmatprep.subr.mxu0 0.0
    %1258 = vmatpush1.msra.mxu0 %v1237
    %1259 = vmatprep.subr.mxu0 0.0
    %1260 = vmatpush1.msra.mxu0 %v1238
    %1261 = vmatprep.subr.mxu0 0.0
    %1262 = vmatpush1.msra.mxu0 %v1239
    %1263 = vmatprep.subr.mxu0 0.0
    %1264 = vmatpush1.msra.mxu0 %v1240
    %1265 = vmatprep.subr.mxu0 0.0
    %1266 = vmatpush1.msra.mxu0 %v1241
    %1267 = vmatprep.subr.mxu0 0.0
    %1268 = vmatpush1.msra.mxu0 %v1242
    %1269 = vmatprep.subr.mxu0 0.0
    %1270 = vmatpush1.msra.mxu0 %v1243
    %1271 = vmatprep.subr.mxu0 0.0
    %1272 = vmatpush1.msra.mxu0 0.0
    %1273 = vmatprep.subr.mxu0 0.0
    %1274 = vmatpush1.msra.mxu0 0.0
    %1275 = vmatprep.subr.mxu0 0.0
    %1276 = vmatpush1.msra.mxu0 0.0
    %1277 = vmatprep.subr.mxu0 0.0
    %1278 = vmatpush1.msra.mxu0 0.0
    %1279 = vmatprep.subr.mxu0 0.0
    %1280 = vmatpush1.msra.mxu0 0.0
    %1281 = vmatprep.subr.mxu0 0.0
    %1282 = vmatpush1.msra.mxu0 0.0
    %1283 = vmatprep.subr.mxu0 0.0
    %1284 = vmatpush1.msra.mxu0 0.0
    %1285 = vmatprep.subr.mxu0 0.0
    %1286 = vmatpush1.msra.mxu0 0.0
    %1287 = vmatprep.subr.mxu0 0.0
    %1288 = vmatpush1.msra.mxu0 0.0
    %1289 = vmatprep.subr.mxu0 0.0
    %1290 = vmatpush1.msra.mxu0 0.0
    %1291 = vmatprep.subr.mxu0 0.0
    %1292 = vmatpush1.msra.mxu0 0.0
    %1293 = vmatprep.subr.mxu0 0.0
    %1294 = vmatpush1.msra.mxu0 0.0
    %1295 = vmatprep.subr.mxu0 0.0
    %1296 = vmatpush1.msra.mxu0 0.0
    %1297 = vmatprep.subr.mxu0 0.0
    %1298 = vmatpush1.msra.mxu0 0.0
    %1299 = vmatprep.subr.mxu0 0.0
    %1300 = vmatpush1.msra.mxu0 0.0
    %1301 = vmatprep.subr.mxu0 0.0
    %1302 = vmatpush1.msra.mxu0 0.0
    %1303 = vmatprep.subr.mxu0 0.0
    %1304 = vmatpush1.msra.mxu0 0.0
    %1305 = vmatprep.subr.mxu0 0.0
    %1306 = vmatpush1.msra.mxu0 0.0
    %1307 = vmatprep.subr.mxu0 0.0
    %1308 = vmatpush1.msra.mxu0 0.0
    %1309 = vmatprep.subr.mxu0 0.0
    %1310 = vmatpush1.msra.mxu0 0.0
    %1311 = vmatprep.subr.mxu0 0.0
    %1312 = vmatpush1.msra.mxu0 0.0
    %1313 = vmatprep.subr.mxu0 0.0
    %1314 = vmatpush1.msra.mxu0 0.0
    %1315 = vmatprep.subr.mxu0 0.0
    %1316 = vmatpush1.msra.mxu0 0.0
    %1317 = vmatprep.subr.mxu0 0.0
    %1318 = vmatpush1.msra.mxu0 0.0
    %1319 = vmatprep.mubr.f32.mxu0 0.0
    %1320 = vmatmul.mubr.f32.gmra.mrb[0].mxu0 %v1250
    %v1321 = vpop.f32.mrb[0].mxu0
    %v1322 = vadd.f32 %v1247, %v1321
    %v1323 = vpop.f32.mrb[0].mxu0
    %1324 = vmatprep.mubr.f32.mxu0 0.0
    %1325 = vmatmul.mubr.f32.gmra.mrb[0].mxu0 %v1253
    %v1326 = vpop.f32.mrb[0].mxu0
    %v1327 = vadd.f32 %v1247, %v1326
    %v1328 = vpop.f32.mrb[0].mxu0
    %1329 = vdwg.mxu0
    %v1330 = vadd.f32 %v1143, %v1322
    %v1331 = vadd.f32 %v1144, %v1327
    %v1332 = vsel %vm56, %v1330, 0.0
    %1333 = vadd.xlane.f32.xlu0 %v1332
    %v1334 = vpop.xlane.xlu0 %1333
    %v1335 = vsel %vm56, %v1331, 0.0
    %1336 = vadd.xlane.f32.xlu0 %v1335
    %v1337 = vpop.xlane.xlu0 %1336
    %v1338 = vmul.f32 %v1334, %v1108
    %v1339 = vmul.f32 %v1337, %v1108
    %v1340 = vmul.f32 %v1330, %v1330
    %v1341 = vmul.f32 %v1331, %v1331
    %v1342 = vsel %vm56, %v1340, 0.0
    %1343 = vadd.xlane.f32.xlu0 %v1342
    %v1344 = vpop.xlane.xlu0 %1343
    %v1345 = vsel %vm56, %v1341, 0.0
    %1346 = vadd.xlane.f32.xlu0 %v1345
    %v1347 = vpop.xlane.xlu0 %1346
    %v1348 = vmul.f32 %v1344, %v1108
    %v1349 = vmul.f32 %v1347, %v1108
    %v1350 = vmul.f32 %v1338, %v1338
    %v1351 = vmul.f32 %v1339, %v1339
    %v1352 = vsub.f32 %v1348, %v1350
    %v1353 = vsub.f32 %v1349, %v1351
    %v1354 = vadd.f32 %v1352, 1e-05
    %v1355 = vadd.f32 %v1353, 1e-05
    %v1356 = vrsqrt.pop %v1354
    %v1357 = vrsqrt.pop %v1355
    %v1358 = vsub.f32 %v1330, %v1338
    %v1359 = vsub.f32 %v1331, %v1339
    %v1360 = vmul.f32 %v1358, %v1356
    %v1361 = vmul.f32 %v1359, %v1357
    %v1362 = vlaneseq
    %v1363 = vshrl.u32 %v1362, 7
    %v1364 = vsub.s32 0, %v1363
    %v1365 = vrot.slane %v44, %v1364
    %v1366 = vmul.f32 %v1360, %v1365
    %v1367 = vmul.f32 %v1361, %v1365
    %v1368 = vlaneseq
    %v1369 = vshrl.u32 %v1368, 7
    %v1370 = vsub.s32 0, %v1369
    %v1371 = vrot.slane %v45, %v1370
    %v1372 = vadd.f32 %v1366, %v1371
    %v1373 = vadd.f32 %v1367, %v1371
    %1374 = vst.msk [vmem:[#allocation6] sm:$0xff] %vm56, %v1372
    %1375 = vst.msk [vmem:[#allocation6 + $0x8] sm:$0xff] %vm56, %v1373
    // Predicated region
    $region30: #{tpu_custom_call.1} parent=1 // pred_check
      _
    $region31: #{tpu_custom_call.1} parent=1 // pred_check_branch
      %1377 = sbr.rel (0) target = $region33
    $region32: #{tpu_custom_call.1} parent=1 // pred_region
      %s1379 = ssub.s32 256, 256
      %1380 = vsyncadd [#allocation5], %s1379
      %s1381 = sshll.u32 [#allocation6], 4
      %s1382 = int_to_ptr.vmem [resolvable:$true] %s1381
      %1387 = dma.vmem_to_hbm [thread:$0]  %s1382, 256, %s6, [#allocation5], 128, 128, 8
    $region33: #{tpu_custom_call.1} parent=1 // pred_fallthru
      _
    // Predicated region
    $region34: #{tpu_custom_call.1} parent=1 // pred_check
      _
    $region35: #{tpu_custom_call.1} parent=1 // pred_check_branch
      %1389 = sbr.rel (0) target = $region37
    $region36: #{tpu_custom_call.1} parent=1 // pred_region
      %1390 = dma.done [#allocation5], 256
    $region37: #{tpu_custom_call.1} parent=1 // pred_fallthru
      _
    %1391 = vsyncpa [#allocation4], 1
    %1392 = vsyncpa [#allocation5], 1

</llo_original>
